<compile_context>
chip_gen: v6e
topology: v6e:2x2x1
jax: 0.10.0
libtpu: 0.0.40
codegen_flags: <defaults>
</compile_context>

<pallas_src>
import functools

import jax
import jax.numpy as jnp
from jax.experimental import pallas as pl
from jax.experimental.pallas import tpu as pltpu


# ---------------------------------------------------------------------------
# Fused kernel: embedding -> LSTM -> attention -> Linear -> BatchNorm (eval).
# ---------------------------------------------------------------------------
def fused_rnn_kernel(tok_ref, emb_wih_ref, whh_ref, bias_ref,
                     wlin_ref, blin_ref, scale_ref, shift_ref, o_ref,
                     xg_ref, hs_ref, *, seq_len, batch, hidden):
    T, B, H = seq_len, batch, hidden

    # ---- embedding lookup fused with the LSTM input projection -----------
    # x_gates[k] = emb[tok[k]] @ W_ih^T + (b_ih + b_hh),  k = t*B + b
    # (scalar-indexed row gather from the pre-projected table in VMEM).
    bias = bias_ref[...]                                          # (1, 4H)
    for k in range(T * B):
        row = emb_wih_ref[pl.ds(tok_ref[k], 1), :]                # (1, 4H) gather
        xg_ref[pl.ds(k, 1), :] = row + bias

    whh = whh_ref[...]                                            # (H, 4H) bf16

    # ---- LSTM recurrence (T is small -> statically unrolled) -------------
    h = jnp.zeros((B, H), jnp.float32)
    c = jnp.zeros((B, H), jnp.float32)
    for t in range(T):
        gates = xg_ref[pl.ds(t * B, B), :] + jnp.dot(
            h.astype(jnp.bfloat16), whh,
            preferred_element_type=jnp.float32)                   # (B, 4H)
        sig = jax.nn.sigmoid(gates[:, :3 * H])                    # i|f|o in one pass
        g_g = jnp.tanh(gates[:, 3 * H:])
        i_g = sig[:, 0 * H:1 * H]
        f_g = sig[:, 1 * H:2 * H]
        o_g = sig[:, 2 * H:3 * H]
        c = f_g * c + i_g * g_g
        h = o_g * jnp.tanh(c)
        hs_ref[t] = h                                             # park h_t in VMEM

    # ---- attention: softmax over T of <h_t, h_T>, weighted sum -----------
    # Vectorized over the whole (T, B, H) stack; no per-t Python loops.
    hs = hs_ref[...]                                              # (T, B, H)
    scores = jnp.sum(hs * h[None], axis=-1, keepdims=True)        # (T, B, 1)
    m = jnp.max(scores, axis=0, keepdims=True)                    # (1, B, 1)
    e = jnp.exp(scores - m)
    soft = e / jnp.sum(e, axis=0, keepdims=True)                  # exact softmax
    context = jnp.sum(hs * soft, axis=0)                          # (B, H)

    # ---- Linear head + Dropout (identity) + BatchNorm1d (eval, folded) ---
    # TODO(synk): nn.Dropout(0.3) has no deterministic train-mode equivalent;
    # treated as identity (eval semantics).
    logits = jnp.dot(context, wlin_ref[...],
                     preferred_element_type=jnp.float32) + blin_ref[...]  # (B, C)
    o_ref[...] = logits * scale_ref[...] + shift_ref[...]


# ---------------------------------------------------------------------------
# Parameter packing (one time, outside the kernel).
# ---------------------------------------------------------------------------
def pack_params(params):
    """Repack canonical (PyTorch-layout) params for the fused kernel:
    gate reorder (i,f,g,o)->(i,f,o,g), fuse emb with W_ih^T (vocab padded to a
    multiple of 8), bf16 W_hh for the MXU, fold eval-mode BatchNorm."""
    H = params["whh_t"].shape[0]

    def reorder(w):  # last-dim gate blocks: i|f|g|o  ->  i|f|o|g
        return jnp.concatenate(
            [w[..., 0 * H:2 * H], w[..., 3 * H:4 * H], w[..., 2 * H:3 * H]],
            axis=-1)

    wih_t = reorder(params["wih_t"])                      # (E, 4H)
    whh_t = reorder(params["whh_t"]).astype(jnp.bfloat16)  # (H, 4H) bf16 MXU operand
    bias = reorder(params["bias"])                        # (1, 4H) = b_ih + b_hh
    emb_wih = params["emb"] @ wih_t                       # (V, 4H) fused gather+proj
    V = emb_wih.shape[0]
    Vp = ((V + 7) // 8) * 8                               # sublane-align the table
    if Vp != V:
        emb_wih = jnp.pad(emb_wih, ((0, Vp - V), (0, 0)))
    eps = 1e-5
    scale = params["gamma"] / jnp.sqrt(params["var"] + eps)      # (1, C)
    shift = params["beta"] - params["mean"] * scale              # (1, C)
    return dict(emb_wih=emb_wih, whh_t=whh_t, bias=bias,
                wlin_t=params["wlin_t"], blin=params["blin"],
                scale=scale, shift=shift)


def rnn_attention_forward(tokens, packed, hidden_size):
    """tokens: (B, T) int32 -> (B, num_classes) f32, one fused pallas_call."""
    B, T = tokens.shape
    H = hidden_size
    C = packed["wlin_t"].shape[1]
    # Time-major flat token ids; these live in SMEM inside the kernel.
    tok_flat = jnp.transpose(tokens, (1, 0)).reshape(T * B).astype(jnp.int32)
    kernel = functools.partial(fused_rnn_kernel, seq_len=T, batch=B, hidden=H)
    vmem = pltpu.MemorySpace.VMEM
    return pl.pallas_call(
        kernel,
        out_shape=jax.ShapeDtypeStruct((B, C), jnp.float32),
        in_specs=[
            pl.BlockSpec(memory_space=pltpu.MemorySpace.SMEM),   # token ids
            pl.BlockSpec(memory_space=vmem),                     # emb_wih (Vp, 4H)
            pl.BlockSpec(memory_space=vmem),                     # W_hh^T (bf16)
            pl.BlockSpec(memory_space=vmem),                     # fused bias
            pl.BlockSpec(memory_space=vmem),                     # Linear W^T
            pl.BlockSpec(memory_space=vmem),                     # Linear b
            pl.BlockSpec(memory_space=vmem),                     # BN scale
            pl.BlockSpec(memory_space=vmem),                     # BN shift
        ],
        out_specs=pl.BlockSpec(memory_space=vmem),
        scratch_shapes=[
            pltpu.VMEM((T * B, 4 * H), jnp.float32),             # x_gates staging
            pltpu.VMEM((T, B, H), jnp.float32),                  # per-step hidden states
        ],
    )(tok_flat, packed["emb_wih"], packed["whh_t"], packed["bias"],
      packed["wlin_t"], packed["blin"], packed["scale"], packed["shift"])


# ---------------------------------------------------------------------------
# Pure-JAX reference (canonical params / PyTorch gate order).
# ---------------------------------------------------------------------------
def reference_forward(tokens, params, H):
    emb = params["emb"][tokens]                       # (B, T, E)
    B = emb.shape[0]
    x_seq = jnp.transpose(emb, (1, 0, 2))             # (T, B, E)

    def step(carry, x_t):
        h, c = carry
        gates = x_t @ params["wih_t"] + h @ params["whh_t"] + params["bias"][0]
        i = jax.nn.sigmoid(gates[:, :H])
        f = jax.nn.sigmoid(gates[:, H:2 * H])
        g = jnp.tanh(gates[:, 2 * H:3 * H])
        o = jax.nn.sigmoid(gates[:, 3 * H:])
        c = f * c + i * g
        h = o * jnp.tanh(c)
        return (h, c), h

    (h_fin, _), outs = jax.lax.scan(
        step, (jnp.zeros((B, H), jnp.float32), jnp.zeros((B, H), jnp.float32)), x_seq)
    out_bt = jnp.transpose(outs, (1, 0, 2))           # (B, T, H)
    scores = jnp.einsum("bth,bh->bt", out_bt, h_fin)
    soft = jax.nn.softmax(scores, axis=1)
    context = jnp.einsum("bth,bt->bh", out_bt, soft)
    logits = context @ params["wlin_t"] + params["blin"][0]
    return ((logits - params["mean"][0]) / jnp.sqrt(params["var"][0] + 1e-5)
            * params["gamma"][0] + params["beta"][0])


# ---------------------------------------------------------------------------
if __name__ == "__main__":
    # Model hyper-parameters (small, consistent with the module's forward).
    V, E, H, C, L = 50, 16, 32, 8, 1          # vocab, emb_dim, hidden, classes, layers
    B, T = 2, 8                               # batch, sequence length

    key = jax.random.PRNGKey(0)
    ks = jax.random.split(key, 12)
    scale = 1.0 / (H ** 0.5)

    emb = (jax.random.normal(ks[0], (V, E), jnp.float32) * 0.1).at[0].set(0.0)  # padding_idx=0
    wih_t = jax.random.uniform(ks[1], (E, 4 * H), jnp.float32, -scale, scale)   # W_ih^T
    whh_t = jax.random.uniform(ks[2], (H, 4 * H), jnp.float32, -scale, scale)   # W_hh^T
    b_ih = jax.random.uniform(ks[3], (4 * H,), jnp.float32, -scale, scale)
    b_hh = jax.random.uniform(ks[4], (4 * H,), jnp.float32, -scale, scale)
    wlin_t = jax.random.uniform(ks[5], (H, C), jnp.float32, -scale, scale)      # Linear W^T
    blin = jax.random.uniform(ks[6], (1, C), jnp.float32, -scale, scale)
    gamma = 1.0 + 0.1 * jax.random.normal(ks[7], (1, C), jnp.float32)           # BN weight
    beta = 0.1 * jax.random.normal(ks[8], (1, C), jnp.float32)                  # BN bias
    mean = 0.1 * jax.random.normal(ks[9], (1, C), jnp.float32)                  # running_mean
    var = 1.0 + 0.1 * jnp.abs(jax.random.normal(ks[10], (1, C), jnp.float32))   # running_var

    params = dict(emb=emb, wih_t=wih_t, whh_t=whh_t, bias=(b_ih + b_hh)[None, :],
                  wlin_t=wlin_t, blin=blin, gamma=gamma, beta=beta, mean=mean, var=var)

    tokens = jax.random.randint(ks[11], (B, T), 0, V, jnp.int32)

    packed = pack_params(params)
    fwd = jax.jit(functools.partial(rnn_attention_forward, hidden_size=H))
    out = jax.block_until_ready(fwd(tokens, packed))
    ref = jax.block_until_ready(reference_forward(tokens, params, H))

    assert out.shape == (B, C) and out.dtype == jnp.float32
    assert jnp.allclose(out, ref, atol=2e-2, rtol=2e-2), (out, ref)
    print("KERNEL_OK")
</pallas_src>

<mosaic_0001>
module attributes {stable_mosaic.version = 11 : i64} {
  func.func @fused_rnn_kernel(%arg0: memref<16xi32, #tpu.memory_space<smem>>, %arg1: memref<56x128xf32, #tpu.memory_space<vmem>>, %arg2: memref<32x128xbf16, #tpu.memory_space<vmem>>, %arg3: memref<1x128xf32, #tpu.memory_space<vmem>>, %arg4: memref<32x8xf32, #tpu.memory_space<vmem>>, %arg5: memref<1x8xf32, #tpu.memory_space<vmem>>, %arg6: memref<1x8xf32, #tpu.memory_space<vmem>>, %arg7: memref<1x8xf32, #tpu.memory_space<vmem>>, %arg8: memref<2x8xf32, #tpu.memory_space<vmem>>, %arg9: memref<16x128xf32, #tpu.memory_space<vmem>>, %arg10: memref<8x2x32xf32, #tpu.memory_space<vmem>>) attributes {dimension_semantics = [], scalar_prefetch = 0 : i64, scratch_operands = 2 : i64, tpu.core_type = #tpu.core_type<tc>} {
    %c0 = arith.constant 0 : index
    %c0_0 = arith.constant 0 : index
    %0 = vector.load %arg3[%c0, %c0_0] : memref<1x128xf32, #tpu.memory_space<vmem>>, vector<1x128xf32>
    %c0_1 = arith.constant 0 : index
    %1 = memref.load %arg0[%c0_1] : memref<16xi32, #tpu.memory_space<smem>>
    %2 = arith.index_cast %1 : i32 to index
    %c0_2 = arith.constant 0 : index
    %3 = vector.load %arg1[%2, %c0_2] : memref<56x128xf32, #tpu.memory_space<vmem>>, vector<1x128xf32>
    %4 = arith.addf %3, %0 : vector<1x128xf32>
    %c0_3 = arith.constant 0 : index
    %c0_4 = arith.constant 0 : index
    %5 = vector.load %arg9[%c0_3, %c0_4] : memref<16x128xf32, #tpu.memory_space<vmem>>, vector<1x128xf32>
    tpu.vector_store %arg9[%c0_3, %c0_4], %4 {strides = array<i32>} : memref<16x128xf32, #tpu.memory_space<vmem>>, vector<1x128xf32>,
    %c1 = arith.constant 1 : index
    %6 = memref.load %arg0[%c1] : memref<16xi32, #tpu.memory_space<smem>>
    %7 = arith.index_cast %6 : i32 to index
    %c0_5 = arith.constant 0 : index
    %8 = vector.load %arg1[%7, %c0_5] : memref<56x128xf32, #tpu.memory_space<vmem>>, vector<1x128xf32>
    %9 = arith.addf %8, %0 : vector<1x128xf32>
    %c1_6 = arith.constant 1 : index
    %c0_7 = arith.constant 0 : index
    %10 = vector.load %arg9[%c1_6, %c0_7] : memref<16x128xf32, #tpu.memory_space<vmem>>, vector<1x128xf32>
    tpu.vector_store %arg9[%c1_6, %c0_7], %9 {strides = array<i32>} : memref<16x128xf32, #tpu.memory_space<vmem>>, vector<1x128xf32>,
    %c2 = arith.constant 2 : index
    %11 = memref.load %arg0[%c2] : memref<16xi32, #tpu.memory_space<smem>>
    %12 = arith.index_cast %11 : i32 to index
    %c0_8 = arith.constant 0 : index
    %13 = vector.load %arg1[%12, %c0_8] : memref<56x128xf32, #tpu.memory_space<vmem>>, vector<1x128xf32>
    %14 = arith.addf %13, %0 : vector<1x128xf32>
    %c2_9 = arith.constant 2 : index
    %c0_10 = arith.constant 0 : index
    %15 = vector.load %arg9[%c2_9, %c0_10] : memref<16x128xf32, #tpu.memory_space<vmem>>, vector<1x128xf32>
    tpu.vector_store %arg9[%c2_9, %c0_10], %14 {strides = array<i32>} : memref<16x128xf32, #tpu.memory_space<vmem>>, vector<1x128xf32>,
    %c3 = arith.constant 3 : index
    %16 = memref.load %arg0[%c3] : memref<16xi32, #tpu.memory_space<smem>>
    %17 = arith.index_cast %16 : i32 to index
    %c0_11 = arith.constant 0 : index
    %18 = vector.load %arg1[%17, %c0_11] : memref<56x128xf32, #tpu.memory_space<vmem>>, vector<1x128xf32>
    %19 = arith.addf %18, %0 : vector<1x128xf32>
    %c3_12 = arith.constant 3 : index
    %c0_13 = arith.constant 0 : index
    %20 = vector.load %arg9[%c3_12, %c0_13] : memref<16x128xf32, #tpu.memory_space<vmem>>, vector<1x128xf32>
    tpu.vector_store %arg9[%c3_12, %c0_13], %19 {strides = array<i32>} : memref<16x128xf32, #tpu.memory_space<vmem>>, vector<1x128xf32>,
    %c4 = arith.constant 4 : index
    %21 = memref.load %arg0[%c4] : memref<16xi32, #tpu.memory_space<smem>>
    %22 = arith.index_cast %21 : i32 to index
    %c0_14 = arith.constant 0 : index
    %23 = vector.load %arg1[%22, %c0_14] : memref<56x128xf32, #tpu.memory_space<vmem>>, vector<1x128xf32>
    %24 = arith.addf %23, %0 : vector<1x128xf32>
    %c4_15 = arith.constant 4 : index
    %c0_16 = arith.constant 0 : index
    %25 = vector.load %arg9[%c4_15, %c0_16] : memref<16x128xf32, #tpu.memory_space<vmem>>, vector<1x128xf32>
    tpu.vector_store %arg9[%c4_15, %c0_16], %24 {strides = array<i32>} : memref<16x128xf32, #tpu.memory_space<vmem>>, vector<1x128xf32>,
    %c5 = arith.constant 5 : index
    %26 = memref.load %arg0[%c5] : memref<16xi32, #tpu.memory_space<smem>>
    %27 = arith.index_cast %26 : i32 to index
    %c0_17 = arith.constant 0 : index
    %28 = vector.load %arg1[%27, %c0_17] : memref<56x128xf32, #tpu.memory_space<vmem>>, vector<1x128xf32>
    %29 = arith.addf %28, %0 : vector<1x128xf32>
    %c5_18 = arith.constant 5 : index
    %c0_19 = arith.constant 0 : index
    %30 = vector.load %arg9[%c5_18, %c0_19] : memref<16x128xf32, #tpu.memory_space<vmem>>, vector<1x128xf32>
    tpu.vector_store %arg9[%c5_18, %c0_19], %29 {strides = array<i32>} : memref<16x128xf32, #tpu.memory_space<vmem>>, vector<1x128xf32>,
    %c6 = arith.constant 6 : index
    %31 = memref.load %arg0[%c6] : memref<16xi32, #tpu.memory_space<smem>>
    %32 = arith.index_cast %31 : i32 to index
    %c0_20 = arith.constant 0 : index
    %33 = vector.load %arg1[%32, %c0_20] : memref<56x128xf32, #tpu.memory_space<vmem>>, vector<1x128xf32>
    %34 = arith.addf %33, %0 : vector<1x128xf32>
    %c6_21 = arith.constant 6 : index
    %c0_22 = arith.constant 0 : index
    %35 = vector.load %arg9[%c6_21, %c0_22] : memref<16x128xf32, #tpu.memory_space<vmem>>, vector<1x128xf32>
    tpu.vector_store %arg9[%c6_21, %c0_22], %34 {strides = array<i32>} : memref<16x128xf32, #tpu.memory_space<vmem>>, vector<1x128xf32>,
    %c7 = arith.constant 7 : index
    %36 = memref.load %arg0[%c7] : memref<16xi32, #tpu.memory_space<smem>>
    %37 = arith.index_cast %36 : i32 to index
    %c0_23 = arith.constant 0 : index
    %38 = vector.load %arg1[%37, %c0_23] : memref<56x128xf32, #tpu.memory_space<vmem>>, vector<1x128xf32>
    %39 = arith.addf %38, %0 : vector<1x128xf32>
    %c7_24 = arith.constant 7 : index
    %c0_25 = arith.constant 0 : index
    %40 = vector.load %arg9[%c7_24, %c0_25] : memref<16x128xf32, #tpu.memory_space<vmem>>, vector<1x128xf32>
    tpu.vector_store %arg9[%c7_24, %c0_25], %39 {strides = array<i32>} : memref<16x128xf32, #tpu.memory_space<vmem>>, vector<1x128xf32>,
    %c8 = arith.constant 8 : index
    %41 = memref.load %arg0[%c8] : memref<16xi32, #tpu.memory_space<smem>>
    %42 = arith.index_cast %41 : i32 to index
    %c0_26 = arith.constant 0 : index
    %43 = vector.load %arg1[%42, %c0_26] : memref<56x128xf32, #tpu.memory_space<vmem>>, vector<1x128xf32>
    %44 = arith.addf %43, %0 : vector<1x128xf32>
    %c8_27 = arith.constant 8 : index
    %c0_28 = arith.constant 0 : index
    %45 = vector.load %arg9[%c8_27, %c0_28] : memref<16x128xf32, #tpu.memory_space<vmem>>, vector<1x128xf32>
    tpu.vector_store %arg9[%c8_27, %c0_28], %44 {strides = array<i32>} : memref<16x128xf32, #tpu.memory_space<vmem>>, vector<1x128xf32>,
    %c9 = arith.constant 9 : index
    %46 = memref.load %arg0[%c9] : memref<16xi32, #tpu.memory_space<smem>>
    %47 = arith.index_cast %46 : i32 to index
    %c0_29 = arith.constant 0 : index
    %48 = vector.load %arg1[%47, %c0_29] : memref<56x128xf32, #tpu.memory_space<vmem>>, vector<1x128xf32>
    %49 = arith.addf %48, %0 : vector<1x128xf32>
    %c9_30 = arith.constant 9 : index
    %c0_31 = arith.constant 0 : index
    %50 = vector.load %arg9[%c9_30, %c0_31] : memref<16x128xf32, #tpu.memory_space<vmem>>, vector<1x128xf32>
    tpu.vector_store %arg9[%c9_30, %c0_31], %49 {strides = array<i32>} : memref<16x128xf32, #tpu.memory_space<vmem>>, vector<1x128xf32>,
    %c10 = arith.constant 10 : index
    %51 = memref.load %arg0[%c10] : memref<16xi32, #tpu.memory_space<smem>>
    %52 = arith.index_cast %51 : i32 to index
    %c0_32 = arith.constant 0 : index
    %53 = vector.load %arg1[%52, %c0_32] : memref<56x128xf32, #tpu.memory_space<vmem>>, vector<1x128xf32>
    %54 = arith.addf %53, %0 : vector<1x128xf32>
    %c10_33 = arith.constant 10 : index
    %c0_34 = arith.constant 0 : index
    %55 = vector.load %arg9[%c10_33, %c0_34] : memref<16x128xf32, #tpu.memory_space<vmem>>, vector<1x128xf32>
    tpu.vector_store %arg9[%c10_33, %c0_34], %54 {strides = array<i32>} : memref<16x128xf32, #tpu.memory_space<vmem>>, vector<1x128xf32>,
    %c11 = arith.constant 11 : index
    %56 = memref.load %arg0[%c11] : memref<16xi32, #tpu.memory_space<smem>>
    %57 = arith.index_cast %56 : i32 to index
    %c0_35 = arith.constant 0 : index
    %58 = vector.load %arg1[%57, %c0_35] : memref<56x128xf32, #tpu.memory_space<vmem>>, vector<1x128xf32>
    %59 = arith.addf %58, %0 : vector<1x128xf32>
    %c11_36 = arith.constant 11 : index
    %c0_37 = arith.constant 0 : index
    %60 = vector.load %arg9[%c11_36, %c0_37] : memref<16x128xf32, #tpu.memory_space<vmem>>, vector<1x128xf32>
    tpu.vector_store %arg9[%c11_36, %c0_37], %59 {strides = array<i32>} : memref<16x128xf32, #tpu.memory_space<vmem>>, vector<1x128xf32>,
    %c12 = arith.constant 12 : index
    %61 = memref.load %arg0[%c12] : memref<16xi32, #tpu.memory_space<smem>>
    %62 = arith.index_cast %61 : i32 to index
    %c0_38 = arith.constant 0 : index
    %63 = vector.load %arg1[%62, %c0_38] : memref<56x128xf32, #tpu.memory_space<vmem>>, vector<1x128xf32>
    %64 = arith.addf %63, %0 : vector<1x128xf32>
    %c12_39 = arith.constant 12 : index
    %c0_40 = arith.constant 0 : index
    %65 = vector.load %arg9[%c12_39, %c0_40] : memref<16x128xf32, #tpu.memory_space<vmem>>, vector<1x128xf32>
    tpu.vector_store %arg9[%c12_39, %c0_40], %64 {strides = array<i32>} : memref<16x128xf32, #tpu.memory_space<vmem>>, vector<1x128xf32>,
    %c13 = arith.constant 13 : index
    %66 = memref.load %arg0[%c13] : memref<16xi32, #tpu.memory_space<smem>>
    %67 = arith.index_cast %66 : i32 to index
    %c0_41 = arith.constant 0 : index
    %68 = vector.load %arg1[%67, %c0_41] : memref<56x128xf32, #tpu.memory_space<vmem>>, vector<1x128xf32>
    %69 = arith.addf %68, %0 : vector<1x128xf32>
    %c13_42 = arith.constant 13 : index
    %c0_43 = arith.constant 0 : index
    %70 = vector.load %arg9[%c13_42, %c0_43] : memref<16x128xf32, #tpu.memory_space<vmem>>, vector<1x128xf32>
    tpu.vector_store %arg9[%c13_42, %c0_43], %69 {strides = array<i32>} : memref<16x128xf32, #tpu.memory_space<vmem>>, vector<1x128xf32>,
    %c14 = arith.constant 14 : index
    %71 = memref.load %arg0[%c14] : memref<16xi32, #tpu.memory_space<smem>>
    %72 = arith.index_cast %71 : i32 to index
    %c0_44 = arith.constant 0 : index
    %73 = vector.load %arg1[%72, %c0_44] : memref<56x128xf32, #tpu.memory_space<vmem>>, vector<1x128xf32>
    %74 = arith.addf %73, %0 : vector<1x128xf32>
    %c14_45 = arith.constant 14 : index
    %c0_46 = arith.constant 0 : index
    %75 = vector.load %arg9[%c14_45, %c0_46] : memref<16x128xf32, #tpu.memory_space<vmem>>, vector<1x128xf32>
    tpu.vector_store %arg9[%c14_45, %c0_46], %74 {strides = array<i32>} : memref<16x128xf32, #tpu.memory_space<vmem>>, vector<1x128xf32>,
    %c15 = arith.constant 15 : index
    %76 = memref.load %arg0[%c15] : memref<16xi32, #tpu.memory_space<smem>>
    %77 = arith.index_cast %76 : i32 to index
    %c0_47 = arith.constant 0 : index
    %78 = vector.load %arg1[%77, %c0_47] : memref<56x128xf32, #tpu.memory_space<vmem>>, vector<1x128xf32>
    %79 = arith.addf %78, %0 : vector<1x128xf32>
    %c15_48 = arith.constant 15 : index
    %c0_49 = arith.constant 0 : index
    %80 = vector.load %arg9[%c15_48, %c0_49] : memref<16x128xf32, #tpu.memory_space<vmem>>, vector<1x128xf32>
    tpu.vector_store %arg9[%c15_48, %c0_49], %79 {strides = array<i32>} : memref<16x128xf32, #tpu.memory_space<vmem>>, vector<1x128xf32>,
    %c0_50 = arith.constant 0 : index
    %c0_51 = arith.constant 0 : index
    %81 = vector.load %arg2[%c0_50, %c0_51] : memref<32x128xbf16, #tpu.memory_space<vmem>>, vector<32x128xbf16>
    %cst = arith.constant 0.000000e+00 : f32
    %82 = vector.broadcast %cst : f32 to vector<2x32xf32>
    %cst_52 = arith.constant 0.000000e+00 : f32
    %83 = vector.broadcast %cst_52 : f32 to vector<2x32xf32>
    %c0_53 = arith.constant 0 : index
    %c0_54 = arith.constant 0 : index
    %84 = vector.load %arg9[%c0_53, %c0_54] : memref<16x128xf32, #tpu.memory_space<vmem>>, vector<2x128xf32>
    %85 = arith.truncf %82 : vector<2x32xf32> to vector<2x32xbf16>
    %cst_55 = arith.constant dense<0.000000e+00> : vector<2x128xf32>
    %86 = tpu.matmul %85, %81, %cst_55 {dimension_numbers = #tpu.dot_dimension_numbers<[1], [0], [0], [1], [0, 0, 1, 1], [], []>} : vector<2x32xbf16>, vector<32x128xbf16>, vector<2x128xf32> -> vector<2x128xf32>
    %87 = arith.addf %84, %86 : vector<2x128xf32>
    %88 = vector.extract_strided_slice %87 {offsets = [0, 0], sizes = [2, 96], strides = [1, 1]} : vector<2x128xf32> to vector<2x96xf32>
    %89 = arith.negf %88 : vector<2x96xf32>
    %90 = math.exp %89 : vector<2x96xf32>
    %cst_56 = arith.constant 1.000000e+00 : f32
    %91 = vector.broadcast %cst_56 : f32 to vector<2x96xf32>
    %92 = arith.addf %91, %90 : vector<2x96xf32>
    %93 = arith.divf %91, %92 : vector<2x96xf32>
    %94 = vector.extract_strided_slice %87 {offsets = [0, 96], sizes = [2, 32], strides = [1, 1]} : vector<2x128xf32> to vector<2x32xf32>
    %95 = math.tanh %94 : vector<2x32xf32>
    %96 = vector.extract_strided_slice %93 {offsets = [0, 0], sizes = [2, 32], strides = [1, 1]} : vector<2x96xf32> to vector<2x32xf32>
    %97 = vector.extract_strided_slice %93 {offsets = [0, 32], sizes = [2, 32], strides = [1, 1]} : vector<2x96xf32> to vector<2x32xf32>
    %98 = vector.extract_strided_slice %93 {offsets = [0, 64], sizes = [2, 32], strides = [1, 1]} : vector<2x96xf32> to vector<2x32xf32>
    %99 = arith.mulf %97, %83 : vector<2x32xf32>
    %100 = arith.mulf %96, %95 : vector<2x32xf32>
    %101 = arith.addf %99, %100 : vector<2x32xf32>
    %102 = math.tanh %101 : vector<2x32xf32>
    %103 = arith.mulf %98, %102 : vector<2x32xf32>
    %c0_57 = arith.constant 0 : index
    %c0_58 = arith.constant 0 : index
    %c0_59 = arith.constant 0 : index
    %104 = vector.load %arg10[%c0_57, %c0_58, %c0_59] : memref<8x2x32xf32, #tpu.memory_space<vmem>>, vector<1x2x32xf32>
    %105 = vector.shape_cast %104 : vector<1x2x32xf32> to vector<2x32xf32>
    %106 = vector.shape_cast %103 : vector<2x32xf32> to vector<1x2x32xf32>
    tpu.vector_store %arg10[%c0_57, %c0_58, %c0_59], %106 {strides = array<i32>} : memref<8x2x32xf32, #tpu.memory_space<vmem>>, vector<1x2x32xf32>,
    %c2_60 = arith.constant 2 : index
    %c0_61 = arith.constant 0 : index
    %107 = vector.load %arg9[%c2_60, %c0_61] : memref<16x128xf32, #tpu.memory_space<vmem>>, vector<2x128xf32>
    %108 = arith.truncf %103 : vector<2x32xf32> to vector<2x32xbf16>
    %cst_62 = arith.constant dense<0.000000e+00> : vector<2x128xf32>
    %109 = tpu.matmul %108, %81, %cst_62 {dimension_numbers = #tpu.dot_dimension_numbers<[1], [0], [0], [1], [0, 0, 1, 1], [], []>} : vector<2x32xbf16>, vector<32x128xbf16>, vector<2x128xf32> -> vector<2x128xf32>
    %110 = arith.addf %107, %109 : vector<2x128xf32>
    %111 = vector.extract_strided_slice %110 {offsets = [0, 0], sizes = [2, 96], strides = [1, 1]} : vector<2x128xf32> to vector<2x96xf32>
    %112 = arith.negf %111 : vector<2x96xf32>
    %113 = math.exp %112 : vector<2x96xf32>
    %cst_63 = arith.constant 1.000000e+00 : f32
    %114 = vector.broadcast %cst_63 : f32 to vector<2x96xf32>
    %115 = arith.addf %114, %113 : vector<2x96xf32>
    %116 = arith.divf %114, %115 : vector<2x96xf32>
    %117 = vector.extract_strided_slice %110 {offsets = [0, 96], sizes = [2, 32], strides = [1, 1]} : vector<2x128xf32> to vector<2x32xf32>
    %118 = math.tanh %117 : vector<2x32xf32>
    %119 = vector.extract_strided_slice %116 {offsets = [0, 0], sizes = [2, 32], strides = [1, 1]} : vector<2x96xf32> to vector<2x32xf32>
    %120 = vector.extract_strided_slice %116 {offsets = [0, 32], sizes = [2, 32], strides = [1, 1]} : vector<2x96xf32> to vector<2x32xf32>
    %121 = vector.extract_strided_slice %116 {offsets = [0, 64], sizes = [2, 32], strides = [1, 1]} : vector<2x96xf32> to vector<2x32xf32>
    %122 = arith.mulf %120, %101 : vector<2x32xf32>
    %123 = arith.mulf %119, %118 : vector<2x32xf32>
    %124 = arith.addf %122, %123 : vector<2x32xf32>
    %125 = math.tanh %124 : vector<2x32xf32>
    %126 = arith.mulf %121, %125 : vector<2x32xf32>
    %c1_64 = arith.constant 1 : index
    %c0_65 = arith.constant 0 : index
    %c0_66 = arith.constant 0 : index
    %127 = vector.load %arg10[%c1_64, %c0_65, %c0_66] : memref<8x2x32xf32, #tpu.memory_space<vmem>>, vector<1x2x32xf32>
    %128 = vector.shape_cast %127 : vector<1x2x32xf32> to vector<2x32xf32>
    %129 = vector.shape_cast %126 : vector<2x32xf32> to vector<1x2x32xf32>
    tpu.vector_store %arg10[%c1_64, %c0_65, %c0_66], %129 {strides = array<i32>} : memref<8x2x32xf32, #tpu.memory_space<vmem>>, vector<1x2x32xf32>,
    %c4_67 = arith.constant 4 : index
    %c0_68 = arith.constant 0 : index
    %130 = vector.load %arg9[%c4_67, %c0_68] : memref<16x128xf32, #tpu.memory_space<vmem>>, vector<2x128xf32>
    %131 = arith.truncf %126 : vector<2x32xf32> to vector<2x32xbf16>
    %cst_69 = arith.constant dense<0.000000e+00> : vector<2x128xf32>
    %132 = tpu.matmul %131, %81, %cst_69 {dimension_numbers = #tpu.dot_dimension_numbers<[1], [0], [0], [1], [0, 0, 1, 1], [], []>} : vector<2x32xbf16>, vector<32x128xbf16>, vector<2x128xf32> -> vector<2x128xf32>
    %133 = arith.addf %130, %132 : vector<2x128xf32>
    %134 = vector.extract_strided_slice %133 {offsets = [0, 0], sizes = [2, 96], strides = [1, 1]} : vector<2x128xf32> to vector<2x96xf32>
    %135 = arith.negf %134 : vector<2x96xf32>
    %136 = math.exp %135 : vector<2x96xf32>
    %cst_70 = arith.constant 1.000000e+00 : f32
    %137 = vector.broadcast %cst_70 : f32 to vector<2x96xf32>
    %138 = arith.addf %137, %136 : vector<2x96xf32>
    %139 = arith.divf %137, %138 : vector<2x96xf32>
    %140 = vector.extract_strided_slice %133 {offsets = [0, 96], sizes = [2, 32], strides = [1, 1]} : vector<2x128xf32> to vector<2x32xf32>
    %141 = math.tanh %140 : vector<2x32xf32>
    %142 = vector.extract_strided_slice %139 {offsets = [0, 0], sizes = [2, 32], strides = [1, 1]} : vector<2x96xf32> to vector<2x32xf32>
    %143 = vector.extract_strided_slice %139 {offsets = [0, 32], sizes = [2, 32], strides = [1, 1]} : vector<2x96xf32> to vector<2x32xf32>
    %144 = vector.extract_strided_slice %139 {offsets = [0, 64], sizes = [2, 32], strides = [1, 1]} : vector<2x96xf32> to vector<2x32xf32>
    %145 = arith.mulf %143, %124 : vector<2x32xf32>
    %146 = arith.mulf %142, %141 : vector<2x32xf32>
    %147 = arith.addf %145, %146 : vector<2x32xf32>
    %148 = math.tanh %147 : vector<2x32xf32>
    %149 = arith.mulf %144, %148 : vector<2x32xf32>
    %c2_71 = arith.constant 2 : index
    %c0_72 = arith.constant 0 : index
    %c0_73 = arith.constant 0 : index
    %150 = vector.load %arg10[%c2_71, %c0_72, %c0_73] : memref<8x2x32xf32, #tpu.memory_space<vmem>>, vector<1x2x32xf32>
    %151 = vector.shape_cast %150 : vector<1x2x32xf32> to vector<2x32xf32>
    %152 = vector.shape_cast %149 : vector<2x32xf32> to vector<1x2x32xf32>
    tpu.vector_store %arg10[%c2_71, %c0_72, %c0_73], %152 {strides = array<i32>} : memref<8x2x32xf32, #tpu.memory_space<vmem>>, vector<1x2x32xf32>,
    %c6_74 = arith.constant 6 : index
    %c0_75 = arith.constant 0 : index
    %153 = vector.load %arg9[%c6_74, %c0_75] : memref<16x128xf32, #tpu.memory_space<vmem>>, vector<2x128xf32>
    %154 = arith.truncf %149 : vector<2x32xf32> to vector<2x32xbf16>
    %cst_76 = arith.constant dense<0.000000e+00> : vector<2x128xf32>
    %155 = tpu.matmul %154, %81, %cst_76 {dimension_numbers = #tpu.dot_dimension_numbers<[1], [0], [0], [1], [0, 0, 1, 1], [], []>} : vector<2x32xbf16>, vector<32x128xbf16>, vector<2x128xf32> -> vector<2x128xf32>
    %156 = arith.addf %153, %155 : vector<2x128xf32>
    %157 = vector.extract_strided_slice %156 {offsets = [0, 0], sizes = [2, 96], strides = [1, 1]} : vector<2x128xf32> to vector<2x96xf32>
    %158 = arith.negf %157 : vector<2x96xf32>
    %159 = math.exp %158 : vector<2x96xf32>
    %cst_77 = arith.constant 1.000000e+00 : f32
    %160 = vector.broadcast %cst_77 : f32 to vector<2x96xf32>
    %161 = arith.addf %160, %159 : vector<2x96xf32>
    %162 = arith.divf %160, %161 : vector<2x96xf32>
    %163 = vector.extract_strided_slice %156 {offsets = [0, 96], sizes = [2, 32], strides = [1, 1]} : vector<2x128xf32> to vector<2x32xf32>
    %164 = math.tanh %163 : vector<2x32xf32>
    %165 = vector.extract_strided_slice %162 {offsets = [0, 0], sizes = [2, 32], strides = [1, 1]} : vector<2x96xf32> to vector<2x32xf32>
    %166 = vector.extract_strided_slice %162 {offsets = [0, 32], sizes = [2, 32], strides = [1, 1]} : vector<2x96xf32> to vector<2x32xf32>
    %167 = vector.extract_strided_slice %162 {offsets = [0, 64], sizes = [2, 32], strides = [1, 1]} : vector<2x96xf32> to vector<2x32xf32>
    %168 = arith.mulf %166, %147 : vector<2x32xf32>
    %169 = arith.mulf %165, %164 : vector<2x32xf32>
    %170 = arith.addf %168, %169 : vector<2x32xf32>
    %171 = math.tanh %170 : vector<2x32xf32>
    %172 = arith.mulf %167, %171 : vector<2x32xf32>
    %c3_78 = arith.constant 3 : index
    %c0_79 = arith.constant 0 : index
    %c0_80 = arith.constant 0 : index
    %173 = vector.load %arg10[%c3_78, %c0_79, %c0_80] : memref<8x2x32xf32, #tpu.memory_space<vmem>>, vector<1x2x32xf32>
    %174 = vector.shape_cast %173 : vector<1x2x32xf32> to vector<2x32xf32>
    %175 = vector.shape_cast %172 : vector<2x32xf32> to vector<1x2x32xf32>
    tpu.vector_store %arg10[%c3_78, %c0_79, %c0_80], %175 {strides = array<i32>} : memref<8x2x32xf32, #tpu.memory_space<vmem>>, vector<1x2x32xf32>,
    %c8_81 = arith.constant 8 : index
    %c0_82 = arith.constant 0 : index
    %176 = vector.load %arg9[%c8_81, %c0_82] : memref<16x128xf32, #tpu.memory_space<vmem>>, vector<2x128xf32>
    %177 = arith.truncf %172 : vector<2x32xf32> to vector<2x32xbf16>
    %cst_83 = arith.constant dense<0.000000e+00> : vector<2x128xf32>
    %178 = tpu.matmul %177, %81, %cst_83 {dimension_numbers = #tpu.dot_dimension_numbers<[1], [0], [0], [1], [0, 0, 1, 1], [], []>} : vector<2x32xbf16>, vector<32x128xbf16>, vector<2x128xf32> -> vector<2x128xf32>
    %179 = arith.addf %176, %178 : vector<2x128xf32>
    %180 = vector.extract_strided_slice %179 {offsets = [0, 0], sizes = [2, 96], strides = [1, 1]} : vector<2x128xf32> to vector<2x96xf32>
    %181 = arith.negf %180 : vector<2x96xf32>
    %182 = math.exp %181 : vector<2x96xf32>
    %cst_84 = arith.constant 1.000000e+00 : f32
    %183 = vector.broadcast %cst_84 : f32 to vector<2x96xf32>
    %184 = arith.addf %183, %182 : vector<2x96xf32>
    %185 = arith.divf %183, %184 : vector<2x96xf32>
    %186 = vector.extract_strided_slice %179 {offsets = [0, 96], sizes = [2, 32], strides = [1, 1]} : vector<2x128xf32> to vector<2x32xf32>
    %187 = math.tanh %186 : vector<2x32xf32>
    %188 = vector.extract_strided_slice %185 {offsets = [0, 0], sizes = [2, 32], strides = [1, 1]} : vector<2x96xf32> to vector<2x32xf32>
    %189 = vector.extract_strided_slice %185 {offsets = [0, 32], sizes = [2, 32], strides = [1, 1]} : vector<2x96xf32> to vector<2x32xf32>
    %190 = vector.extract_strided_slice %185 {offsets = [0, 64], sizes = [2, 32], strides = [1, 1]} : vector<2x96xf32> to vector<2x32xf32>
    %191 = arith.mulf %189, %170 : vector<2x32xf32>
    %192 = arith.mulf %188, %187 : vector<2x32xf32>
    %193 = arith.addf %191, %192 : vector<2x32xf32>
    %194 = math.tanh %193 : vector<2x32xf32>
    %195 = arith.mulf %190, %194 : vector<2x32xf32>
    %c4_85 = arith.constant 4 : index
    %c0_86 = arith.constant 0 : index
    %c0_87 = arith.constant 0 : index
    %196 = vector.load %arg10[%c4_85, %c0_86, %c0_87] : memref<8x2x32xf32, #tpu.memory_space<vmem>>, vector<1x2x32xf32>
    %197 = vector.shape_cast %196 : vector<1x2x32xf32> to vector<2x32xf32>
    %198 = vector.shape_cast %195 : vector<2x32xf32> to vector<1x2x32xf32>
    tpu.vector_store %arg10[%c4_85, %c0_86, %c0_87], %198 {strides = array<i32>} : memref<8x2x32xf32, #tpu.memory_space<vmem>>, vector<1x2x32xf32>,
    %c10_88 = arith.constant 10 : index
    %c0_89 = arith.constant 0 : index
    %199 = vector.load %arg9[%c10_88, %c0_89] : memref<16x128xf32, #tpu.memory_space<vmem>>, vector<2x128xf32>
    %200 = arith.truncf %195 : vector<2x32xf32> to vector<2x32xbf16>
    %cst_90 = arith.constant dense<0.000000e+00> : vector<2x128xf32>
    %201 = tpu.matmul %200, %81, %cst_90 {dimension_numbers = #tpu.dot_dimension_numbers<[1], [0], [0], [1], [0, 0, 1, 1], [], []>} : vector<2x32xbf16>, vector<32x128xbf16>, vector<2x128xf32> -> vector<2x128xf32>
    %202 = arith.addf %199, %201 : vector<2x128xf32>
    %203 = vector.extract_strided_slice %202 {offsets = [0, 0], sizes = [2, 96], strides = [1, 1]} : vector<2x128xf32> to vector<2x96xf32>
    %204 = arith.negf %203 : vector<2x96xf32>
    %205 = math.exp %204 : vector<2x96xf32>
    %cst_91 = arith.constant 1.000000e+00 : f32
    %206 = vector.broadcast %cst_91 : f32 to vector<2x96xf32>
    %207 = arith.addf %206, %205 : vector<2x96xf32>
    %208 = arith.divf %206, %207 : vector<2x96xf32>
    %209 = vector.extract_strided_slice %202 {offsets = [0, 96], sizes = [2, 32], strides = [1, 1]} : vector<2x128xf32> to vector<2x32xf32>
    %210 = math.tanh %209 : vector<2x32xf32>
    %211 = vector.extract_strided_slice %208 {offsets = [0, 0], sizes = [2, 32], strides = [1, 1]} : vector<2x96xf32> to vector<2x32xf32>
    %212 = vector.extract_strided_slice %208 {offsets = [0, 32], sizes = [2, 32], strides = [1, 1]} : vector<2x96xf32> to vector<2x32xf32>
    %213 = vector.extract_strided_slice %208 {offsets = [0, 64], sizes = [2, 32], strides = [1, 1]} : vector<2x96xf32> to vector<2x32xf32>
    %214 = arith.mulf %212, %193 : vector<2x32xf32>
    %215 = arith.mulf %211, %210 : vector<2x32xf32>
    %216 = arith.addf %214, %215 : vector<2x32xf32>
    %217 = math.tanh %216 : vector<2x32xf32>
    %218 = arith.mulf %213, %217 : vector<2x32xf32>
    %c5_92 = arith.constant 5 : index
    %c0_93 = arith.constant 0 : index
    %c0_94 = arith.constant 0 : index
    %219 = vector.load %arg10[%c5_92, %c0_93, %c0_94] : memref<8x2x32xf32, #tpu.memory_space<vmem>>, vector<1x2x32xf32>
    %220 = vector.shape_cast %219 : vector<1x2x32xf32> to vector<2x32xf32>
    %221 = vector.shape_cast %218 : vector<2x32xf32> to vector<1x2x32xf32>
    tpu.vector_store %arg10[%c5_92, %c0_93, %c0_94], %221 {strides = array<i32>} : memref<8x2x32xf32, #tpu.memory_space<vmem>>, vector<1x2x32xf32>,
    %c12_95 = arith.constant 12 : index
    %c0_96 = arith.constant 0 : index
    %222 = vector.load %arg9[%c12_95, %c0_96] : memref<16x128xf32, #tpu.memory_space<vmem>>, vector<2x128xf32>
    %223 = arith.truncf %218 : vector<2x32xf32> to vector<2x32xbf16>
    %cst_97 = arith.constant dense<0.000000e+00> : vector<2x128xf32>
    %224 = tpu.matmul %223, %81, %cst_97 {dimension_numbers = #tpu.dot_dimension_numbers<[1], [0], [0], [1], [0, 0, 1, 1], [], []>} : vector<2x32xbf16>, vector<32x128xbf16>, vector<2x128xf32> -> vector<2x128xf32>
    %225 = arith.addf %222, %224 : vector<2x128xf32>
    %226 = vector.extract_strided_slice %225 {offsets = [0, 0], sizes = [2, 96], strides = [1, 1]} : vector<2x128xf32> to vector<2x96xf32>
    %227 = arith.negf %226 : vector<2x96xf32>
    %228 = math.exp %227 : vector<2x96xf32>
    %cst_98 = arith.constant 1.000000e+00 : f32
    %229 = vector.broadcast %cst_98 : f32 to vector<2x96xf32>
    %230 = arith.addf %229, %228 : vector<2x96xf32>
    %231 = arith.divf %229, %230 : vector<2x96xf32>
    %232 = vector.extract_strided_slice %225 {offsets = [0, 96], sizes = [2, 32], strides = [1, 1]} : vector<2x128xf32> to vector<2x32xf32>
    %233 = math.tanh %232 : vector<2x32xf32>
    %234 = vector.extract_strided_slice %231 {offsets = [0, 0], sizes = [2, 32], strides = [1, 1]} : vector<2x96xf32> to vector<2x32xf32>
    %235 = vector.extract_strided_slice %231 {offsets = [0, 32], sizes = [2, 32], strides = [1, 1]} : vector<2x96xf32> to vector<2x32xf32>
    %236 = vector.extract_strided_slice %231 {offsets = [0, 64], sizes = [2, 32], strides = [1, 1]} : vector<2x96xf32> to vector<2x32xf32>
    %237 = arith.mulf %235, %216 : vector<2x32xf32>
    %238 = arith.mulf %234, %233 : vector<2x32xf32>
    %239 = arith.addf %237, %238 : vector<2x32xf32>
    %240 = math.tanh %239 : vector<2x32xf32>
    %241 = arith.mulf %236, %240 : vector<2x32xf32>
    %c6_99 = arith.constant 6 : index
    %c0_100 = arith.constant 0 : index
    %c0_101 = arith.constant 0 : index
    %242 = vector.load %arg10[%c6_99, %c0_100, %c0_101] : memref<8x2x32xf32, #tpu.memory_space<vmem>>, vector<1x2x32xf32>
    %243 = vector.shape_cast %242 : vector<1x2x32xf32> to vector<2x32xf32>
    %244 = vector.shape_cast %241 : vector<2x32xf32> to vector<1x2x32xf32>
    tpu.vector_store %arg10[%c6_99, %c0_100, %c0_101], %244 {strides = array<i32>} : memref<8x2x32xf32, #tpu.memory_space<vmem>>, vector<1x2x32xf32>,
    %c14_102 = arith.constant 14 : index
    %c0_103 = arith.constant 0 : index
    %245 = vector.load %arg9[%c14_102, %c0_103] : memref<16x128xf32, #tpu.memory_space<vmem>>, vector<2x128xf32>
    %246 = arith.truncf %241 : vector<2x32xf32> to vector<2x32xbf16>
    %cst_104 = arith.constant dense<0.000000e+00> : vector<2x128xf32>
    %247 = tpu.matmul %246, %81, %cst_104 {dimension_numbers = #tpu.dot_dimension_numbers<[1], [0], [0], [1], [0, 0, 1, 1], [], []>} : vector<2x32xbf16>, vector<32x128xbf16>, vector<2x128xf32> -> vector<2x128xf32>
    %248 = arith.addf %245, %247 : vector<2x128xf32>
    %249 = vector.extract_strided_slice %248 {offsets = [0, 0], sizes = [2, 96], strides = [1, 1]} : vector<2x128xf32> to vector<2x96xf32>
    %250 = arith.negf %249 : vector<2x96xf32>
    %251 = math.exp %250 : vector<2x96xf32>
    %cst_105 = arith.constant 1.000000e+00 : f32
    %252 = vector.broadcast %cst_105 : f32 to vector<2x96xf32>
    %253 = arith.addf %252, %251 : vector<2x96xf32>
    %254 = arith.divf %252, %253 : vector<2x96xf32>
    %255 = vector.extract_strided_slice %248 {offsets = [0, 96], sizes = [2, 32], strides = [1, 1]} : vector<2x128xf32> to vector<2x32xf32>
    %256 = math.tanh %255 : vector<2x32xf32>
    %257 = vector.extract_strided_slice %254 {offsets = [0, 0], sizes = [2, 32], strides = [1, 1]} : vector<2x96xf32> to vector<2x32xf32>
    %258 = vector.extract_strided_slice %254 {offsets = [0, 32], sizes = [2, 32], strides = [1, 1]} : vector<2x96xf32> to vector<2x32xf32>
    %259 = vector.extract_strided_slice %254 {offsets = [0, 64], sizes = [2, 32], strides = [1, 1]} : vector<2x96xf32> to vector<2x32xf32>
    %260 = arith.mulf %258, %239 : vector<2x32xf32>
    %261 = arith.mulf %257, %256 : vector<2x32xf32>
    %262 = arith.addf %260, %261 : vector<2x32xf32>
    %263 = math.tanh %262 : vector<2x32xf32>
    %264 = arith.mulf %259, %263 : vector<2x32xf32>
    %c7_106 = arith.constant 7 : index
    %c0_107 = arith.constant 0 : index
    %c0_108 = arith.constant 0 : index
    %265 = vector.load %arg10[%c7_106, %c0_107, %c0_108] : memref<8x2x32xf32, #tpu.memory_space<vmem>>, vector<1x2x32xf32>
    %266 = vector.shape_cast %265 : vector<1x2x32xf32> to vector<2x32xf32>
    %267 = vector.shape_cast %264 : vector<2x32xf32> to vector<1x2x32xf32>
    tpu.vector_store %arg10[%c7_106, %c0_107, %c0_108], %267 {strides = array<i32>} : memref<8x2x32xf32, #tpu.memory_space<vmem>>, vector<1x2x32xf32>,
    %c0_109 = arith.constant 0 : index
    %c0_110 = arith.constant 0 : index
    %c0_111 = arith.constant 0 : index
    %268 = vector.load %arg10[%c0_109, %c0_110, %c0_111] : memref<8x2x32xf32, #tpu.memory_space<vmem>>, vector<8x2x32xf32>
    %269 = vector.shape_cast %264 : vector<2x32xf32> to vector<1x2x32xf32>
    %270 = vector.broadcast %269 : vector<1x2x32xf32> to vector<8x2x32xf32>
    %271 = arith.mulf %268, %270 : vector<8x2x32xf32>
    %cst_112 = arith.constant dense<0.000000e+00> : vector<8x2xf32>
    %272 = vector.multi_reduction <add>, %271, %cst_112 [2] : vector<8x2x32xf32> to vector<8x2xf32>
    %273 = vector.shape_cast %272 : vector<8x2xf32> to vector<8x2x1xf32>
    %cst_113 = arith.constant dense<0xFF800000> : vector<2x1xf32>
    %274 = vector.multi_reduction <maximumf>, %273, %cst_113 [0] : vector<8x2x1xf32> to vector<2x1xf32>
    %275 = vector.shape_cast %274 : vector<2x1xf32> to vector<1x2x1xf32>
    %276 = vector.broadcast %275 : vector<1x2x1xf32> to vector<8x2x1xf32>
    %277 = arith.subf %273, %276 : vector<8x2x1xf32>
    %278 = math.exp %277 : vector<8x2x1xf32>
    %cst_114 = arith.constant dense<0.000000e+00> : vector<2x1xf32>
    %279 = vector.multi_reduction <add>, %278, %cst_114 [0] : vector<8x2x1xf32> to vector<2x1xf32>
    %280 = vector.shape_cast %279 : vector<2x1xf32> to vector<1x2x1xf32>
    %281 = vector.broadcast %280 : vector<1x2x1xf32> to vector<8x2x1xf32>
    %282 = arith.divf %278, %281 : vector<8x2x1xf32>
    %283 = vector.broadcast %282 : vector<8x2x1xf32> to vector<8x2x32xf32>
    %284 = arith.mulf %268, %283 : vector<8x2x32xf32>
    %cst_115 = arith.constant dense<0.000000e+00> : vector<2x32xf32>
    %285 = vector.multi_reduction <add>, %284, %cst_115 [0] : vector<8x2x32xf32> to vector<2x32xf32>
    %c0_116 = arith.constant 0 : index
    %c0_117 = arith.constant 0 : index
    %286 = vector.load %arg4[%c0_116, %c0_117] : memref<32x8xf32, #tpu.memory_space<vmem>>, vector<32x8xf32>
    %cst_118 = arith.constant dense<0.000000e+00> : vector<2x8xf32>
    %287 = tpu.matmul %285, %286, %cst_118 {dimension_numbers = #tpu.dot_dimension_numbers<[1], [0], [0], [1], [0, 0, 1, 1], [], []>} : vector<2x32xf32>, vector<32x8xf32>, vector<2x8xf32> -> vector<2x8xf32>
    %c0_119 = arith.constant 0 : index
    %c0_120 = arith.constant 0 : index
    %288 = vector.load %arg5[%c0_119, %c0_120] : memref<1x8xf32, #tpu.memory_space<vmem>>, vector<1x8xf32>
    %289 = vector.broadcast %288 : vector<1x8xf32> to vector<2x8xf32>
    %290 = arith.addf %287, %289 : vector<2x8xf32>
    %c0_121 = arith.constant 0 : index
    %c0_122 = arith.constant 0 : index
    %291 = vector.load %arg6[%c0_121, %c0_122] : memref<1x8xf32, #tpu.memory_space<vmem>>, vector<1x8xf32>
    %292 = vector.broadcast %291 : vector<1x8xf32> to vector<2x8xf32>
    %293 = arith.mulf %290, %292 : vector<2x8xf32>
    %c0_123 = arith.constant 0 : index
    %c0_124 = arith.constant 0 : index
    %294 = vector.load %arg7[%c0_123, %c0_124] : memref<1x8xf32, #tpu.memory_space<vmem>>, vector<1x8xf32>
    %295 = vector.broadcast %294 : vector<1x8xf32> to vector<2x8xf32>
    %296 = arith.addf %293, %295 : vector<2x8xf32>
    %c0_125 = arith.constant 0 : index
    %c0_126 = arith.constant 0 : index
    %297 = vector.load %arg8[%c0_125, %c0_126] : memref<2x8xf32, #tpu.memory_space<vmem>>, vector<2x8xf32>
    tpu.vector_store %arg8[%c0_125, %c0_126], %296 {strides = array<i32>} : memref<2x8xf32, #tpu.memory_space<vmem>>, vector<2x8xf32>,
    return
  }
}

</mosaic_0001>

<llo_original>
// kernel: rnn_attention_forward.1
$region0: #{rnn_attention_forward.1}
  #allocation0 [shape = 'u32[]', space=smem, size = 0x4, offset = 0x4, fixed_abs, tag = 'smem constant byte address 0x4 - core index']
  #allocation1 [shape = 'u32[144,128]{1,0:T(1,128)}', space=vmem, size = 0x12000, scoped, tag = 'internal scratch']
  #allocation2 [shape = 'f32[16,128]{1,0:T(8,128)}', space=vmem, size = 0x2000, scoped, tag = 'scratch operand']
  #allocation3 [shape = 'f32[8,2,32]{2,1,0:T(2,128)}', space=vmem, size = 0x2000, scoped, tag = 'scratch operand']
  %s0 = inlined_call_operand.vmem [shape: s32[16], index: 0, kind: input, shape index: {}]
  %s1 = inlined_call_operand.vmem [shape: f32[56,128], index: 1, kind: input, shape index: {}]
  %s2 = inlined_call_operand.hbm [shape: bf16[32,128], index: 2, kind: input, shape index: {}]
  %s3 = inlined_call_operand.vmem [shape: f32[1,128], index: 3, kind: input, shape index: {}]
  %s4 = inlined_call_operand.vmem [shape: f32[32,8], index: 4, kind: input, shape index: {}]
  %s5 = inlined_call_operand.vmem [shape: f32[1,8], index: 5, kind: input, shape index: {}]
  %s6 = inlined_call_operand.vmem [shape: f32[1,8], index: 6, kind: input, shape index: {}]
  %s7 = inlined_call_operand.vmem [shape: f32[1,8], index: 7, kind: input, shape index: {}]
  %s8 = inlined_call_operand.hbm [shape: f32[2,8], index: 8, kind: output, shape index: {}]
  %s9 = sld [smem:[#allocation0]]
  $region50: #{rnn_attention_forward.1} parent=0
    _
  %s11 = ssub.s32 1, %s9
  %s12 = scalar_select 0, %s11, %s9
  $region1: #{rnn_attention_forward.1} parent=0
    #allocation4 [shape = 'u8[512]{0}', space=smem, size = 0x200, scoped, tag = 'input window, operand 0, single buffered']
    #allocation5 [shape = 's32[1]{0}', space=sflag, size = 0x4, scoped, tag = 'scoped memory for rnn_attention_forward.1']
    #allocation6 [shape = 's32[1]{0}', space=sflag, size = 0x4, scoped, tag = 'scoped memory for rnn_attention_forward.1']
    #allocation7 [shape = 's32[1]{0}', space=sflag, size = 0x4, scoped, tag = 'scoped memory for rnn_attention_forward.1']
    #allocation8 [shape = 'u8[8192]{0}', space=vmem, size = 0x2000, scoped, tag = 'input window, operand 2, single buffered']
    #allocation9 [shape = 'u8[1024]{0}', space=vmem, size = 0x400, scoped, tag = 'output window, operand 0, single buffered']
    %13 = vsyncpa [#allocation7], 0
    %14 = vsyncpa [#allocation5], 0
    %15 = vsyncpa [#allocation6], 0
    // Predicated region
    $region2: #{rnn_attention_forward.1} parent=1 // pred_check
      _
    $region3: #{rnn_attention_forward.1} parent=1 // pred_check_branch
      %17 = sbr.rel (0) target = $region5
    $region4: #{rnn_attention_forward.1} parent=1 // pred_region
      %s19 = ssub.s32 16, 16
      %20 = vsyncadd [#allocation7], %s19
      %s22 = sshll.u32 %s0, 4
      %s23 = int_to_ptr.vmem [resolvable:$true] %s22
      %25 = dma.vmem_to_smem %s23, 16, [#allocation4], [#allocation7]
    $region5: #{rnn_attention_forward.1} parent=1 // pred_fallthru
      _
    // Predicated region
    $region6: #{rnn_attention_forward.1} parent=1 // pred_check
      _
    $region7: #{rnn_attention_forward.1} parent=1 // pred_check_branch
      %27 = sbr.rel (0) target = $region9
    $region8: #{rnn_attention_forward.1} parent=1 // pred_region
      _
    $region9: #{rnn_attention_forward.1} parent=1 // pred_fallthru
      _
    // Predicated region
    $region10: #{rnn_attention_forward.1} parent=1 // pred_check
      _
    $region11: #{rnn_attention_forward.1} parent=1 // pred_check_branch
      %29 = sbr.rel (0) target = $region13
    $region12: #{rnn_attention_forward.1} parent=1 // pred_region
      %s31 = ssub.s32 256, 256
      %32 = vsyncadd [#allocation5], %s31
      %s33 = sshll.u32 [#allocation8], 4
      %s34 = int_to_ptr.vmem [resolvable:$true] %s33
      %39 = dma.hbm_to_vmem [thread:$0]  %s2, 256, %s34, [#allocation5], 64, 64, 4
    $region13: #{rnn_attention_forward.1} parent=1 // pred_fallthru
      _
    // Predicated region
    $region14: #{rnn_attention_forward.1} parent=1 // pred_check
      _
    $region15: #{rnn_attention_forward.1} parent=1 // pred_check_branch
      %41 = sbr.rel (0) target = $region17
    $region16: #{rnn_attention_forward.1} parent=1 // pred_region
      _
    $region17: #{rnn_attention_forward.1} parent=1 // pred_fallthru
      _
    // Predicated region
    $region18: #{rnn_attention_forward.1} parent=1 // pred_check
      _
    $region19: #{rnn_attention_forward.1} parent=1 // pred_check_branch
      %43 = sbr.rel (0) target = $region21
    $region20: #{rnn_attention_forward.1} parent=1 // pred_region
      _
    $region21: #{rnn_attention_forward.1} parent=1 // pred_fallthru
      _
    // Predicated region
    $region22: #{rnn_attention_forward.1} parent=1 // pred_check
      _
    $region23: #{rnn_attention_forward.1} parent=1 // pred_check_branch
      %45 = sbr.rel (0) target = $region25
    $region24: #{rnn_attention_forward.1} parent=1 // pred_region
      _
    $region25: #{rnn_attention_forward.1} parent=1 // pred_fallthru
      _
    // Predicated region
    $region26: #{rnn_attention_forward.1} parent=1 // pred_check
      _
    $region27: #{rnn_attention_forward.1} parent=1 // pred_check_branch
      %47 = sbr.rel (0) target = $region29
    $region28: #{rnn_attention_forward.1} parent=1 // pred_region
      _
    $region29: #{rnn_attention_forward.1} parent=1 // pred_fallthru
      _
    // Predicated region
    $region30: #{rnn_attention_forward.1} parent=1 // pred_check
      _
    $region31: #{rnn_attention_forward.1} parent=1 // pred_check_branch
      %49 = sbr.rel (0) target = $region33
    $region32: #{rnn_attention_forward.1} parent=1 // pred_region
      _
    $region33: #{rnn_attention_forward.1} parent=1 // pred_fallthru
      _
    // Predicated region
    $region34: #{rnn_attention_forward.1} parent=1 // pred_check
      _
    $region35: #{rnn_attention_forward.1} parent=1 // pred_check_branch
      %51 = sbr.rel (0) target = $region37
    $region36: #{rnn_attention_forward.1} parent=1 // pred_region
      %52 = dma.done [#allocation7], 16
    $region37: #{rnn_attention_forward.1} parent=1 // pred_fallthru
      _
    // Predicated region
    $region38: #{rnn_attention_forward.1} parent=1 // pred_check
      _
    $region39: #{rnn_attention_forward.1} parent=1 // pred_check_branch
      %54 = sbr.rel (0) target = $region41
    $region40: #{rnn_attention_forward.1} parent=1 // pred_region
      %55 = dma.done [#allocation5], 256
    $region41: #{rnn_attention_forward.1} parent=1 // pred_fallthru
      _
    %56 = sfence
    %v58 = vld [vmem:[%s3] sm:$0x1]
    %s59 = sld [smem:[#allocation4]]
    %s60 = scalar_lea.vmem %s1, %s59
    %v61 = vld [vmem:[%s60] sm:$0x1]
    %v62 = vadd.f32 %v61, %v58
    %63 = vst [vmem:[#allocation2] sm:$0x1] %v62
    %s64 = sld [smem:[#allocation4 + $0x1]]
    %s65 = scalar_lea.vmem %s1, %s64
    %v66 = vld [vmem:[%s65] sm:$0x1]
    %v67 = vadd.f32 %v66, %v58
    %68 = vst [vmem:[#allocation2 + $0x1] sm:$0x1] %v67
    %s69 = sld [smem:[#allocation4 + $0x2]]
    %s70 = scalar_lea.vmem %s1, %s69
    %v71 = vld [vmem:[%s70] sm:$0x1]
    %v72 = vadd.f32 %v71, %v58
    %73 = vst [vmem:[#allocation2 + $0x2] sm:$0x1] %v72
    %s74 = sld [smem:[#allocation4 + $0x3]]
    %s75 = scalar_lea.vmem %s1, %s74
    %v76 = vld [vmem:[%s75] sm:$0x1]
    %v77 = vadd.f32 %v76, %v58
    %78 = vst [vmem:[#allocation2 + $0x3] sm:$0x1] %v77
    %s79 = sld [smem:[#allocation4 + $0x4]]
    %s80 = scalar_lea.vmem %s1, %s79
    %v81 = vld [vmem:[%s80] sm:$0x1]
    %v82 = vadd.f32 %v81, %v58
    %83 = vst [vmem:[#allocation2 + $0x4] sm:$0x1] %v82
    %s84 = sld [smem:[#allocation4 + $0x5]]
    %s85 = scalar_lea.vmem %s1, %s84
    %v86 = vld [vmem:[%s85] sm:$0x1]
    %v87 = vadd.f32 %v86, %v58
    %88 = vst [vmem:[#allocation2 + $0x5] sm:$0x1] %v87
    %s89 = sld [smem:[#allocation4 + $0x6]]
    %s90 = scalar_lea.vmem %s1, %s89
    %v91 = vld [vmem:[%s90] sm:$0x1]
    %v92 = vadd.f32 %v91, %v58
    %93 = vst [vmem:[#allocation2 + $0x6] sm:$0x1] %v92
    %s94 = sld [smem:[#allocation4 + $0x7]]
    %s95 = scalar_lea.vmem %s1, %s94
    %v96 = vld [vmem:[%s95] sm:$0x1]
    %v97 = vadd.f32 %v96, %v58
    %98 = vst [vmem:[#allocation2 + $0x7] sm:$0x1] %v97
    %s99 = sld [smem:[#allocation4 + $0x8]]
    %s100 = scalar_lea.vmem %s1, %s99
    %v101 = vld [vmem:[%s100] sm:$0x1]
    %v102 = vadd.f32 %v101, %v58
    %103 = vst [vmem:[#allocation2 + $0x8] sm:$0x1] %v102
    %s104 = sld [smem:[#allocation4 + $0x9]]
    %s105 = scalar_lea.vmem %s1, %s104
    %v106 = vld [vmem:[%s105] sm:$0x1]
    %v107 = vadd.f32 %v106, %v58
    %108 = vst [vmem:[#allocation2 + $0x9] sm:$0x1] %v107
    %s109 = sld [smem:[#allocation4 + $0xa]]
    %s110 = scalar_lea.vmem %s1, %s109
    %v111 = vld [vmem:[%s110] sm:$0x1]
    %v112 = vadd.f32 %v111, %v58
    %113 = vst [vmem:[#allocation2 + $0xa] sm:$0x1] %v112
    %s114 = sld [smem:[#allocation4 + $0xb]]
    %s115 = scalar_lea.vmem %s1, %s114
    %v116 = vld [vmem:[%s115] sm:$0x1]
    %v117 = vadd.f32 %v116, %v58
    %118 = vst [vmem:[#allocation2 + $0xb] sm:$0x1] %v117
    %s119 = sld [smem:[#allocation4 + $0xc]]
    %s120 = scalar_lea.vmem %s1, %s119
    %v121 = vld [vmem:[%s120] sm:$0x1]
    %v122 = vadd.f32 %v121, %v58
    %123 = vst [vmem:[#allocation2 + $0xc] sm:$0x1] %v122
    %s124 = sld [smem:[#allocation4 + $0xd]]
    %s125 = scalar_lea.vmem %s1, %s124
    %v126 = vld [vmem:[%s125] sm:$0x1]
    %v127 = vadd.f32 %v126, %v58
    %128 = vst [vmem:[#allocation2 + $0xd] sm:$0x1] %v127
    %s129 = sld [smem:[#allocation4 + $0xe]]
    %s130 = scalar_lea.vmem %s1, %s129
    %v131 = vld [vmem:[%s130] sm:$0x1]
    %v132 = vadd.f32 %v131, %v58
    %133 = vst [vmem:[#allocation2 + $0xe] sm:$0x1] %v132
    %s134 = sld [smem:[#allocation4 + $0xf]]
    %s135 = scalar_lea.vmem %s1, %s134
    %v136 = vld [vmem:[%s135] sm:$0x1]
    %v137 = vadd.f32 %v136, %v58
    %138 = vst [vmem:[#allocation2 + $0xf] sm:$0x1] %v137
    %v139 = vld [vmem:[#allocation8] sm:$0xf]
    %v140 = vld [vmem:[#allocation8 + $0x4] sm:$0xf]
    %v141 = vld [vmem:[#allocation8 + $0x8] sm:$0xf]
    %v142 = vld [vmem:[#allocation8 + $0xc] sm:$0xf]
    %v143 = vld [vmem:[#allocation2] sm:$0x3]
    %v148 = vunpack.c.l.b16 %v139
    %v149 = vunpack.c.l.b16 %v140
    %v150 = vunpack.c.l.b16 %v141
    %v151 = vunpack.c.l.b16 %v142
    %v152 = vpack.c.b16 %v149, %v148
    %v153 = vpack.c.b16 %v151, %v150
    %vm156 = vcmask 261120
    %v158 = vsel %vm156, 0, 0
    %160 = vmatprep.subr.bf16.mxu0 0
    %161 = vmatpush1.bf16.msra.mxu0 0
    %162 = vmatprep.subr.bf16.mxu0 0
    %163 = vmatpush1.bf16.msra.mxu0 0
    %164 = vmatprep.subr.bf16.mxu0 0
    %165 = vmatpush1.bf16.msra.mxu0 0
    %166 = vmatprep.subr.bf16.mxu0 0
    %167 = vmatpush1.bf16.msra.mxu0 0
    %168 = vmatprep.subr.bf16.mxu0 0
    %169 = vmatpush1.bf16.msra.mxu0 0
    %170 = vmatprep.subr.bf16.mxu0 0
    %171 = vmatpush1.bf16.msra.mxu0 0
    %172 = vmatprep.subr.bf16.mxu0 0
    %173 = vmatpush1.bf16.msra.mxu0 %v153
    %174 = vmatprep.subr.bf16.mxu0 0
    %175 = vmatpush1.bf16.msra.mxu0 %v152
    %176 = vmatprep.subr.bf16.mxu0 0
    %177 = vmatpush2.bf16.msra.mxu0 0
    %178 = vmatprep.subr.bf16.mxu0 0
    %179 = vmatpush2.bf16.msra.mxu0 0
    %180 = vmatprep.subr.bf16.mxu0 0
    %181 = vmatpush2.bf16.msra.mxu0 0
    %182 = vmatprep.subr.bf16.mxu0 0
    %183 = vmatpush2.bf16.msra.mxu0 0
    %184 = vmatprep.subr.bf16.mxu0 0
    %185 = vmatpush2.bf16.msra.mxu0 0
    %186 = vmatprep.subr.bf16.mxu0 0
    %187 = vmatpush2.bf16.msra.mxu0 0
    %188 = vmatprep.subr.bf16.mxu0 0
    %189 = vmatpush2.bf16.msra.mxu0 0
    %190 = vmatprep.subr.bf16.mxu0 0
    %191 = vmatpush2.bf16.msra.mxu0 0
    %192 = vmatprep.mubr.bf16.mxu0 0
    %193 = vmatmul.mubr.bf16.gmra.mxu0 %v158
    %v194 = vpop.f32.mrf.mxu0
    %v195 = vadd.f32 0.0, %v194
    %v196 = vpop.f32.mrf.mxu0
    %v197 = vpop.f32.mrf.mxu0
    %v198 = vpop.f32.mrf.mxu0
    %199 = vdwg.mxu0
    %v200 = vadd.f32 %v143, %v195
    %v201 = vxor.u32 %v200, 2147483648
    %v202 = vmul.f32 %v201, 1.442695
    %v203 = vpow.pop %v202
    %v204 = vadd.f32 %v203, 1.0
    %v205 = vrcp.pop %v204
    %v206 = vmul.f32 1.0, %v205
    %v207 = vtanh.pop %v200
    %v208 = vmul.f32 %v206, 0.0
    %210 = vrot.lane.b32.xlu0 %v207, 32
    %v211 = vpop.permute.xlu0 %210
    %v213 = vmul.f32 %v206, %v211
    %215 = vrot.lane.b32.xlu0 %v213, 32
    %v216 = vpop.permute.xlu0 %215
    %v218 = vadd.f32 %v208, %v216
    %v219 = vtanh.pop %v218
    %221 = vrot.lane.b32.xlu0 %v219, 32
    %v222 = vpop.permute.xlu0 %221
    %v224 = vmul.f32 %v206, %v222
    %226 = vrot.lane.b32.xlu0 %v224, 64
    %v227 = vpop.permute.xlu0 %226
    %vm229 = vcmask 254976
    %230 = vst.msk [vmem:[#allocation3] sm:$0x3] %vm229, %v227
    %v231 = vld [vmem:[#allocation2 + $0x2] sm:$0x3]
    %v232 = vpack.c.bf16 %v224, %v224
    %234 = vrot.lane.b32.xlu0 %v232, 64
    %v235 = vpop.permute.xlu0 %234
    %v237 = vsel %vm156, %v235, 0
    %239 = vmatprep.subr.bf16.mxu0 0
    %240 = vmatpush1.bf16.msra.mxu0 0
    %241 = vmatprep.subr.bf16.mxu0 0
    %242 = vmatpush1.bf16.msra.mxu0 0
    %243 = vmatprep.subr.bf16.mxu0 0
    %244 = vmatpush1.bf16.msra.mxu0 0
    %245 = vmatprep.subr.bf16.mxu0 0
    %246 = vmatpush1.bf16.msra.mxu0 0
    %247 = vmatprep.subr.bf16.mxu0 0
    %248 = vmatpush1.bf16.msra.mxu0 0
    %249 = vmatprep.subr.bf16.mxu0 0
    %250 = vmatpush1.bf16.msra.mxu0 0
    %251 = vmatprep.subr.bf16.mxu0 0
    %252 = vmatpush1.bf16.msra.mxu0 %v153
    %253 = vmatprep.subr.bf16.mxu0 0
    %254 = vmatpush1.bf16.msra.mxu0 %v152
    %255 = vmatprep.subr.bf16.mxu0 0
    %256 = vmatpush2.bf16.msra.mxu0 0
    %257 = vmatprep.subr.bf16.mxu0 0
    %258 = vmatpush2.bf16.msra.mxu0 0
    %259 = vmatprep.subr.bf16.mxu0 0
    %260 = vmatpush2.bf16.msra.mxu0 0
    %261 = vmatprep.subr.bf16.mxu0 0
    %262 = vmatpush2.bf16.msra.mxu0 0
    %263 = vmatprep.subr.bf16.mxu0 0
    %264 = vmatpush2.bf16.msra.mxu0 0
    %265 = vmatprep.subr.bf16.mxu0 0
    %266 = vmatpush2.bf16.msra.mxu0 0
    %267 = vmatprep.subr.bf16.mxu0 0
    %268 = vmatpush2.bf16.msra.mxu0 0
    %269 = vmatprep.subr.bf16.mxu0 0
    %270 = vmatpush2.bf16.msra.mxu0 0
    %271 = vmatprep.mubr.bf16.mxu0 0
    %272 = vmatmul.mubr.bf16.gmra.mxu0 %v237
    %v273 = vpop.f32.mrf.mxu0
    %v274 = vadd.f32 0.0, %v273
    %v275 = vpop.f32.mrf.mxu0
    %v276 = vpop.f32.mrf.mxu0
    %v277 = vpop.f32.mrf.mxu0
    %278 = vdwg.mxu0
    %v279 = vadd.f32 %v231, %v274
    %v280 = vxor.u32 %v279, 2147483648
    %v281 = vmul.f32 %v280, 1.442695
    %v282 = vpow.pop %v281
    %v283 = vadd.f32 %v282, 1.0
    %v284 = vrcp.pop %v283
    %v285 = vmul.f32 1.0, %v284
    %v286 = vtanh.pop %v279
    %v287 = vmul.f32 %v285, %v218
    %289 = vrot.lane.b32.xlu0 %v286, 32
    %v290 = vpop.permute.xlu0 %289
    %v292 = vmul.f32 %v285, %v290
    %294 = vrot.lane.b32.xlu0 %v292, 32
    %v295 = vpop.permute.xlu0 %294
    %v297 = vadd.f32 %v287, %v295
    %v298 = vtanh.pop %v297
    %300 = vrot.lane.b32.xlu0 %v298, 32
    %v301 = vpop.permute.xlu0 %300
    %v303 = vmul.f32 %v285, %v301
    %305 = vrot.lane.b32.xlu0 %v303, 64
    %v306 = vpop.permute.xlu0 %305
    %s308 = scalar_lea.vmem [#allocation3], 2
    %309 = vst.msk [vmem:[%s308] sm:$0x3] %vm229, %v306
    %v310 = vld [vmem:[#allocation2 + $0x4] sm:$0x3]
    %v311 = vpack.c.bf16 %v303, %v303
    %313 = vrot.lane.b32.xlu0 %v311, 64
    %v314 = vpop.permute.xlu0 %313
    %v316 = vsel %vm156, %v314, 0
    %318 = vmatprep.subr.bf16.mxu0 0
    %319 = vmatpush1.bf16.msra.mxu0 0
    %320 = vmatprep.subr.bf16.mxu0 0
    %321 = vmatpush1.bf16.msra.mxu0 0
    %322 = vmatprep.subr.bf16.mxu0 0
    %323 = vmatpush1.bf16.msra.mxu0 0
    %324 = vmatprep.subr.bf16.mxu0 0
    %325 = vmatpush1.bf16.msra.mxu0 0
    %326 = vmatprep.subr.bf16.mxu0 0
    %327 = vmatpush1.bf16.msra.mxu0 0
    %328 = vmatprep.subr.bf16.mxu0 0
    %329 = vmatpush1.bf16.msra.mxu0 0
    %330 = vmatprep.subr.bf16.mxu0 0
    %331 = vmatpush1.bf16.msra.mxu0 %v153
    %332 = vmatprep.subr.bf16.mxu0 0
    %333 = vmatpush1.bf16.msra.mxu0 %v152
    %334 = vmatprep.subr.bf16.mxu0 0
    %335 = vmatpush2.bf16.msra.mxu0 0
    %336 = vmatprep.subr.bf16.mxu0 0
    %337 = vmatpush2.bf16.msra.mxu0 0
    %338 = vmatprep.subr.bf16.mxu0 0
    %339 = vmatpush2.bf16.msra.mxu0 0
    %340 = vmatprep.subr.bf16.mxu0 0
    %341 = vmatpush2.bf16.msra.mxu0 0
    %342 = vmatprep.subr.bf16.mxu0 0
    %343 = vmatpush2.bf16.msra.mxu0 0
    %344 = vmatprep.subr.bf16.mxu0 0
    %345 = vmatpush2.bf16.msra.mxu0 0
    %346 = vmatprep.subr.bf16.mxu0 0
    %347 = vmatpush2.bf16.msra.mxu0 0
    %348 = vmatprep.subr.bf16.mxu0 0
    %349 = vmatpush2.bf16.msra.mxu0 0
    %350 = vmatprep.mubr.bf16.mxu0 0
    %351 = vmatmul.mubr.bf16.gmra.mxu0 %v316
    %v352 = vpop.f32.mrf.mxu0
    %v353 = vadd.f32 0.0, %v352
    %v354 = vpop.f32.mrf.mxu0
    %v355 = vpop.f32.mrf.mxu0
    %v356 = vpop.f32.mrf.mxu0
    %357 = vdwg.mxu0
    %v358 = vadd.f32 %v310, %v353
    %v359 = vxor.u32 %v358, 2147483648
    %v360 = vmul.f32 %v359, 1.442695
    %v361 = vpow.pop %v360
    %v362 = vadd.f32 %v361, 1.0
    %v363 = vrcp.pop %v362
    %v364 = vmul.f32 1.0, %v363
    %v365 = vtanh.pop %v358
    %v366 = vmul.f32 %v364, %v297
    %368 = vrot.lane.b32.xlu0 %v365, 32
    %v369 = vpop.permute.xlu0 %368
    %v371 = vmul.f32 %v364, %v369
    %373 = vrot.lane.b32.xlu0 %v371, 32
    %v374 = vpop.permute.xlu0 %373
    %v376 = vadd.f32 %v366, %v374
    %v377 = vtanh.pop %v376
    %379 = vrot.lane.b32.xlu0 %v377, 32
    %v380 = vpop.permute.xlu0 %379
    %v382 = vmul.f32 %v364, %v380
    %384 = vrot.lane.b32.xlu0 %v382, 64
    %v385 = vpop.permute.xlu0 %384
    %s387 = scalar_lea.vmem [#allocation3], 4
    %388 = vst.msk [vmem:[%s387] sm:$0x3] %vm229, %v385
    %v389 = vld [vmem:[#allocation2 + $0x6] sm:$0x3]
    %v390 = vpack.c.bf16 %v382, %v382
    %392 = vrot.lane.b32.xlu0 %v390, 64
    %v393 = vpop.permute.xlu0 %392
    %v395 = vsel %vm156, %v393, 0
    %397 = vmatprep.subr.bf16.mxu0 0
    %398 = vmatpush1.bf16.msra.mxu0 0
    %399 = vmatprep.subr.bf16.mxu0 0
    %400 = vmatpush1.bf16.msra.mxu0 0
    %401 = vmatprep.subr.bf16.mxu0 0
    %402 = vmatpush1.bf16.msra.mxu0 0
    %403 = vmatprep.subr.bf16.mxu0 0
    %404 = vmatpush1.bf16.msra.mxu0 0
    %405 = vmatprep.subr.bf16.mxu0 0
    %406 = vmatpush1.bf16.msra.mxu0 0
    %407 = vmatprep.subr.bf16.mxu0 0
    %408 = vmatpush1.bf16.msra.mxu0 0
    %409 = vmatprep.subr.bf16.mxu0 0
    %410 = vmatpush1.bf16.msra.mxu0 %v153
    %411 = vmatprep.subr.bf16.mxu0 0
    %412 = vmatpush1.bf16.msra.mxu0 %v152
    %413 = vmatprep.subr.bf16.mxu0 0
    %414 = vmatpush2.bf16.msra.mxu0 0
    %415 = vmatprep.subr.bf16.mxu0 0
    %416 = vmatpush2.bf16.msra.mxu0 0
    %417 = vmatprep.subr.bf16.mxu0 0
    %418 = vmatpush2.bf16.msra.mxu0 0
    %419 = vmatprep.subr.bf16.mxu0 0
    %420 = vmatpush2.bf16.msra.mxu0 0
    %421 = vmatprep.subr.bf16.mxu0 0
    %422 = vmatpush2.bf16.msra.mxu0 0
    %423 = vmatprep.subr.bf16.mxu0 0
    %424 = vmatpush2.bf16.msra.mxu0 0
    %425 = vmatprep.subr.bf16.mxu0 0
    %426 = vmatpush2.bf16.msra.mxu0 0
    %427 = vmatprep.subr.bf16.mxu0 0
    %428 = vmatpush2.bf16.msra.mxu0 0
    %429 = vmatprep.mubr.bf16.mxu0 0
    %430 = vmatmul.mubr.bf16.gmra.mxu0 %v395
    %v431 = vpop.f32.mrf.mxu0
    %v432 = vadd.f32 0.0, %v431
    %v433 = vpop.f32.mrf.mxu0
    %v434 = vpop.f32.mrf.mxu0
    %v435 = vpop.f32.mrf.mxu0
    %436 = vdwg.mxu0
    %v437 = vadd.f32 %v389, %v432
    %v438 = vxor.u32 %v437, 2147483648
    %v439 = vmul.f32 %v438, 1.442695
    %v440 = vpow.pop %v439
    %v441 = vadd.f32 %v440, 1.0
    %v442 = vrcp.pop %v441
    %v443 = vmul.f32 1.0, %v442
    %v444 = vtanh.pop %v437
    %v445 = vmul.f32 %v443, %v376
    %447 = vrot.lane.b32.xlu0 %v444, 32
    %v448 = vpop.permute.xlu0 %447
    %v450 = vmul.f32 %v443, %v448
    %452 = vrot.lane.b32.xlu0 %v450, 32
    %v453 = vpop.permute.xlu0 %452
    %v455 = vadd.f32 %v445, %v453
    %v456 = vtanh.pop %v455
    %458 = vrot.lane.b32.xlu0 %v456, 32
    %v459 = vpop.permute.xlu0 %458
    %v461 = vmul.f32 %v443, %v459
    %463 = vrot.lane.b32.xlu0 %v461, 64
    %v464 = vpop.permute.xlu0 %463
    %s466 = scalar_lea.vmem [#allocation3], 6
    %467 = vst.msk [vmem:[%s466] sm:$0x3] %vm229, %v464
    %v468 = vld [vmem:[#allocation2 + $0x8] sm:$0x3]
    %v469 = vpack.c.bf16 %v461, %v461
    %471 = vrot.lane.b32.xlu0 %v469, 64
    %v472 = vpop.permute.xlu0 %471
    %v474 = vsel %vm156, %v472, 0
    %476 = vmatprep.subr.bf16.mxu0 0
    %477 = vmatpush1.bf16.msra.mxu0 0
    %478 = vmatprep.subr.bf16.mxu0 0
    %479 = vmatpush1.bf16.msra.mxu0 0
    %480 = vmatprep.subr.bf16.mxu0 0
    %481 = vmatpush1.bf16.msra.mxu0 0
    %482 = vmatprep.subr.bf16.mxu0 0
    %483 = vmatpush1.bf16.msra.mxu0 0
    %484 = vmatprep.subr.bf16.mxu0 0
    %485 = vmatpush1.bf16.msra.mxu0 0
    %486 = vmatprep.subr.bf16.mxu0 0
    %487 = vmatpush1.bf16.msra.mxu0 0
    %488 = vmatprep.subr.bf16.mxu0 0
    %489 = vmatpush1.bf16.msra.mxu0 %v153
    %490 = vmatprep.subr.bf16.mxu0 0
    %491 = vmatpush1.bf16.msra.mxu0 %v152
    %492 = vmatprep.subr.bf16.mxu0 0
    %493 = vmatpush2.bf16.msra.mxu0 0
    %494 = vmatprep.subr.bf16.mxu0 0
    %495 = vmatpush2.bf16.msra.mxu0 0
    %496 = vmatprep.subr.bf16.mxu0 0
    %497 = vmatpush2.bf16.msra.mxu0 0
    %498 = vmatprep.subr.bf16.mxu0 0
    %499 = vmatpush2.bf16.msra.mxu0 0
    %500 = vmatprep.subr.bf16.mxu0 0
    %501 = vmatpush2.bf16.msra.mxu0 0
    %502 = vmatprep.subr.bf16.mxu0 0
    %503 = vmatpush2.bf16.msra.mxu0 0
    %504 = vmatprep.subr.bf16.mxu0 0
    %505 = vmatpush2.bf16.msra.mxu0 0
    %506 = vmatprep.subr.bf16.mxu0 0
    %507 = vmatpush2.bf16.msra.mxu0 0
    %508 = vmatprep.mubr.bf16.mxu0 0
    %509 = vmatmul.mubr.bf16.gmra.mxu0 %v474
    %v510 = vpop.f32.mrf.mxu0
    %v511 = vadd.f32 0.0, %v510
    %v512 = vpop.f32.mrf.mxu0
    %v513 = vpop.f32.mrf.mxu0
    %v514 = vpop.f32.mrf.mxu0
    %515 = vdwg.mxu0
    %v516 = vadd.f32 %v468, %v511
    %v517 = vxor.u32 %v516, 2147483648
    %v518 = vmul.f32 %v517, 1.442695
    %v519 = vpow.pop %v518
    %v520 = vadd.f32 %v519, 1.0
    %v521 = vrcp.pop %v520
    %v522 = vmul.f32 1.0, %v521
    %v523 = vtanh.pop %v516
    %v524 = vmul.f32 %v522, %v455
    %526 = vrot.lane.b32.xlu0 %v523, 32
    %v527 = vpop.permute.xlu0 %526
    %v529 = vmul.f32 %v522, %v527
    %531 = vrot.lane.b32.xlu0 %v529, 32
    %v532 = vpop.permute.xlu0 %531
    %v534 = vadd.f32 %v524, %v532
    %v535 = vtanh.pop %v534
    %537 = vrot.lane.b32.xlu0 %v535, 32
    %v538 = vpop.permute.xlu0 %537
    %v540 = vmul.f32 %v522, %v538
    %542 = vrot.lane.b32.xlu0 %v540, 64
    %v543 = vpop.permute.xlu0 %542
    %s545 = scalar_lea.vmem [#allocation3], 8
    %546 = vst.msk [vmem:[%s545] sm:$0x3] %vm229, %v543
    %v547 = vld [vmem:[#allocation2 + $0xa] sm:$0x3]
    %v548 = vpack.c.bf16 %v540, %v540
    %550 = vrot.lane.b32.xlu0 %v548, 64
    %v551 = vpop.permute.xlu0 %550
    %v553 = vsel %vm156, %v551, 0
    %555 = vmatprep.subr.bf16.mxu0 0
    %556 = vmatpush1.bf16.msra.mxu0 0
    %557 = vmatprep.subr.bf16.mxu0 0
    %558 = vmatpush1.bf16.msra.mxu0 0
    %559 = vmatprep.subr.bf16.mxu0 0
    %560 = vmatpush1.bf16.msra.mxu0 0
    %561 = vmatprep.subr.bf16.mxu0 0
    %562 = vmatpush1.bf16.msra.mxu0 0
    %563 = vmatprep.subr.bf16.mxu0 0
    %564 = vmatpush1.bf16.msra.mxu0 0
    %565 = vmatprep.subr.bf16.mxu0 0
    %566 = vmatpush1.bf16.msra.mxu0 0
    %567 = vmatprep.subr.bf16.mxu0 0
    %568 = vmatpush1.bf16.msra.mxu0 %v153
    %569 = vmatprep.subr.bf16.mxu0 0
    %570 = vmatpush1.bf16.msra.mxu0 %v152
    %571 = vmatprep.subr.bf16.mxu0 0
    %572 = vmatpush2.bf16.msra.mxu0 0
    %573 = vmatprep.subr.bf16.mxu0 0
    %574 = vmatpush2.bf16.msra.mxu0 0
    %575 = vmatprep.subr.bf16.mxu0 0
    %576 = vmatpush2.bf16.msra.mxu0 0
    %577 = vmatprep.subr.bf16.mxu0 0
    %578 = vmatpush2.bf16.msra.mxu0 0
    %579 = vmatprep.subr.bf16.mxu0 0
    %580 = vmatpush2.bf16.msra.mxu0 0
    %581 = vmatprep.subr.bf16.mxu0 0
    %582 = vmatpush2.bf16.msra.mxu0 0
    %583 = vmatprep.subr.bf16.mxu0 0
    %584 = vmatpush2.bf16.msra.mxu0 0
    %585 = vmatprep.subr.bf16.mxu0 0
    %586 = vmatpush2.bf16.msra.mxu0 0
    %587 = vmatprep.mubr.bf16.mxu0 0
    %588 = vmatmul.mubr.bf16.gmra.mxu0 %v553
    %v589 = vpop.f32.mrf.mxu0
    %v590 = vadd.f32 0.0, %v589
    %v591 = vpop.f32.mrf.mxu0
    %v592 = vpop.f32.mrf.mxu0
    %v593 = vpop.f32.mrf.mxu0
    %594 = vdwg.mxu0
    %v595 = vadd.f32 %v547, %v590
    %v596 = vxor.u32 %v595, 2147483648
    %v597 = vmul.f32 %v596, 1.442695
    %v598 = vpow.pop %v597
    %v599 = vadd.f32 %v598, 1.0
    %v600 = vrcp.pop %v599
    %v601 = vmul.f32 1.0, %v600
    %v602 = vtanh.pop %v595
    %v603 = vmul.f32 %v601, %v534
    %605 = vrot.lane.b32.xlu0 %v602, 32
    %v606 = vpop.permute.xlu0 %605
    %v608 = vmul.f32 %v601, %v606
    %610 = vrot.lane.b32.xlu0 %v608, 32
    %v611 = vpop.permute.xlu0 %610
    %v613 = vadd.f32 %v603, %v611
    %v614 = vtanh.pop %v613
    %616 = vrot.lane.b32.xlu0 %v614, 32
    %v617 = vpop.permute.xlu0 %616
    %v619 = vmul.f32 %v601, %v617
    %621 = vrot.lane.b32.xlu0 %v619, 64
    %v622 = vpop.permute.xlu0 %621
    %s624 = scalar_lea.vmem [#allocation3], 10
    %625 = vst.msk [vmem:[%s624] sm:$0x3] %vm229, %v622
    %v626 = vld [vmem:[#allocation2 + $0xc] sm:$0x3]
    %v627 = vpack.c.bf16 %v619, %v619
    %629 = vrot.lane.b32.xlu0 %v627, 64
    %v630 = vpop.permute.xlu0 %629
    %v632 = vsel %vm156, %v630, 0
    %634 = vmatprep.subr.bf16.mxu0 0
    %635 = vmatpush1.bf16.msra.mxu0 0
    %636 = vmatprep.subr.bf16.mxu0 0
    %637 = vmatpush1.bf16.msra.mxu0 0
    %638 = vmatprep.subr.bf16.mxu0 0
    %639 = vmatpush1.bf16.msra.mxu0 0
    %640 = vmatprep.subr.bf16.mxu0 0
    %641 = vmatpush1.bf16.msra.mxu0 0
    %642 = vmatprep.subr.bf16.mxu0 0
    %643 = vmatpush1.bf16.msra.mxu0 0
    %644 = vmatprep.subr.bf16.mxu0 0
    %645 = vmatpush1.bf16.msra.mxu0 0
    %646 = vmatprep.subr.bf16.mxu0 0
    %647 = vmatpush1.bf16.msra.mxu0 %v153
    %648 = vmatprep.subr.bf16.mxu0 0
    %649 = vmatpush1.bf16.msra.mxu0 %v152
    %650 = vmatprep.subr.bf16.mxu0 0
    %651 = vmatpush2.bf16.msra.mxu0 0
    %652 = vmatprep.subr.bf16.mxu0 0
    %653 = vmatpush2.bf16.msra.mxu0 0
    %654 = vmatprep.subr.bf16.mxu0 0
    %655 = vmatpush2.bf16.msra.mxu0 0
    %656 = vmatprep.subr.bf16.mxu0 0
    %657 = vmatpush2.bf16.msra.mxu0 0
    %658 = vmatprep.subr.bf16.mxu0 0
    %659 = vmatpush2.bf16.msra.mxu0 0
    %660 = vmatprep.subr.bf16.mxu0 0
    %661 = vmatpush2.bf16.msra.mxu0 0
    %662 = vmatprep.subr.bf16.mxu0 0
    %663 = vmatpush2.bf16.msra.mxu0 0
    %664 = vmatprep.subr.bf16.mxu0 0
    %665 = vmatpush2.bf16.msra.mxu0 0
    %666 = vmatprep.mubr.bf16.mxu0 0
    %667 = vmatmul.mubr.bf16.gmra.mxu0 %v632
    %v668 = vpop.f32.mrf.mxu0
    %v669 = vadd.f32 0.0, %v668
    %v670 = vpop.f32.mrf.mxu0
    %v671 = vpop.f32.mrf.mxu0
    %v672 = vpop.f32.mrf.mxu0
    %673 = vdwg.mxu0
    %v674 = vadd.f32 %v626, %v669
    %v675 = vxor.u32 %v674, 2147483648
    %v676 = vmul.f32 %v675, 1.442695
    %v677 = vpow.pop %v676
    %v678 = vadd.f32 %v677, 1.0
    %v679 = vrcp.pop %v678
    %v680 = vmul.f32 1.0, %v679
    %v681 = vtanh.pop %v674
    %v682 = vmul.f32 %v680, %v613
    %684 = vrot.lane.b32.xlu0 %v681, 32
    %v685 = vpop.permute.xlu0 %684
    %v687 = vmul.f32 %v680, %v685
    %689 = vrot.lane.b32.xlu0 %v687, 32
    %v690 = vpop.permute.xlu0 %689
    %v692 = vadd.f32 %v682, %v690
    %v693 = vtanh.pop %v692
    %695 = vrot.lane.b32.xlu0 %v693, 32
    %v696 = vpop.permute.xlu0 %695
    %v698 = vmul.f32 %v680, %v696
    %700 = vrot.lane.b32.xlu0 %v698, 64
    %v701 = vpop.permute.xlu0 %700
    %s703 = scalar_lea.vmem [#allocation3], 12
    %704 = vst.msk [vmem:[%s703] sm:$0x3] %vm229, %v701
    %v705 = vld [vmem:[#allocation2 + $0xe] sm:$0x3]
    %v706 = vpack.c.bf16 %v698, %v698
    %708 = vrot.lane.b32.xlu0 %v706, 64
    %v709 = vpop.permute.xlu0 %708
    %v711 = vsel %vm156, %v709, 0
    %713 = vmatprep.subr.bf16.mxu0 0
    %714 = vmatpush1.bf16.msra.mxu0 0
    %715 = vmatprep.subr.bf16.mxu0 0
    %716 = vmatpush1.bf16.msra.mxu0 0
    %717 = vmatprep.subr.bf16.mxu0 0
    %718 = vmatpush1.bf16.msra.mxu0 0
    %719 = vmatprep.subr.bf16.mxu0 0
    %720 = vmatpush1.bf16.msra.mxu0 0
    %721 = vmatprep.subr.bf16.mxu0 0
    %722 = vmatpush1.bf16.msra.mxu0 0
    %723 = vmatprep.subr.bf16.mxu0 0
    %724 = vmatpush1.bf16.msra.mxu0 0
    %725 = vmatprep.subr.bf16.mxu0 0
    %726 = vmatpush1.bf16.msra.mxu0 %v153
    %727 = vmatprep.subr.bf16.mxu0 0
    %728 = vmatpush1.bf16.msra.mxu0 %v152
    %729 = vmatprep.subr.bf16.mxu0 0
    %730 = vmatpush2.bf16.msra.mxu0 0
    %731 = vmatprep.subr.bf16.mxu0 0
    %732 = vmatpush2.bf16.msra.mxu0 0
    %733 = vmatprep.subr.bf16.mxu0 0
    %734 = vmatpush2.bf16.msra.mxu0 0
    %735 = vmatprep.subr.bf16.mxu0 0
    %736 = vmatpush2.bf16.msra.mxu0 0
    %737 = vmatprep.subr.bf16.mxu0 0
    %738 = vmatpush2.bf16.msra.mxu0 0
    %739 = vmatprep.subr.bf16.mxu0 0
    %740 = vmatpush2.bf16.msra.mxu0 0
    %741 = vmatprep.subr.bf16.mxu0 0
    %742 = vmatpush2.bf16.msra.mxu0 0
    %743 = vmatprep.subr.bf16.mxu0 0
    %744 = vmatpush2.bf16.msra.mxu0 0
    %745 = vmatprep.mubr.bf16.mxu0 0
    %746 = vmatmul.mubr.bf16.gmra.mxu0 %v711
    %v747 = vpop.f32.mrf.mxu0
    %v748 = vadd.f32 0.0, %v747
    %v749 = vpop.f32.mrf.mxu0
    %v750 = vpop.f32.mrf.mxu0
    %v751 = vpop.f32.mrf.mxu0
    %752 = vdwg.mxu0
    %v753 = vadd.f32 %v705, %v748
    %v754 = vxor.u32 %v753, 2147483648
    %v755 = vmul.f32 %v754, 1.442695
    %v756 = vpow.pop %v755
    %v757 = vadd.f32 %v756, 1.0
    %v758 = vrcp.pop %v757
    %v759 = vmul.f32 1.0, %v758
    %v760 = vtanh.pop %v753
    %v761 = vmul.f32 %v759, %v692
    %763 = vrot.lane.b32.xlu0 %v760, 32
    %v764 = vpop.permute.xlu0 %763
    %v766 = vmul.f32 %v759, %v764
    %768 = vrot.lane.b32.xlu0 %v766, 32
    %v769 = vpop.permute.xlu0 %768
    %v771 = vadd.f32 %v761, %v769
    %v772 = vtanh.pop %v771
    %774 = vrot.lane.b32.xlu0 %v772, 32
    %v775 = vpop.permute.xlu0 %774
    %v777 = vmul.f32 %v759, %v775
    %779 = vrot.lane.b32.xlu0 %v777, 64
    %v780 = vpop.permute.xlu0 %779
    %s782 = scalar_lea.vmem [#allocation3], 14
    %783 = vst.msk [vmem:[%s782] sm:$0x3] %vm229, %v780
    %v784 = vld [vmem:[#allocation3] sm:$0x3]
    %v785 = vld [vmem:[#allocation3 + $0x2] sm:$0x3]
    %v786 = vld [vmem:[#allocation3 + $0x4] sm:$0x3]
    %v787 = vld [vmem:[#allocation3 + $0x6] sm:$0x3]
    %v788 = vld [vmem:[#allocation3 + $0x8] sm:$0x3]
    %v789 = vld [vmem:[#allocation3 + $0xa] sm:$0x3]
    %v790 = vld [vmem:[#allocation3 + $0xc] sm:$0x3]
    %v791 = vld [vmem:[#allocation3 + $0xe] sm:$0x3]
    %v792 = vmul.f32 %v784, %v780
    %v793 = vmul.f32 %v785, %v780
    %v794 = vmul.f32 %v786, %v780
    %v795 = vmul.f32 %v787, %v780
    %v796 = vmul.f32 %v788, %v780
    %v797 = vmul.f32 %v789, %v780
    %v798 = vmul.f32 %v790, %v780
    %v799 = vmul.f32 %v791, %v780
    %v800 = vsel %vm229, %v792, 0.0
    %801 = vadd.xlane.f32.xlu0 %v800
    %v802 = vpop.xlane.xlu0 %801
    %v803 = vsel %vm229, %v793, 0.0
    %804 = vadd.xlane.f32.xlu0 %v803
    %v805 = vpop.xlane.xlu0 %804
    %v806 = vsel %vm229, %v794, 0.0
    %807 = vadd.xlane.f32.xlu0 %v806
    %v808 = vpop.xlane.xlu0 %807
    %v809 = vsel %vm229, %v795, 0.0
    %810 = vadd.xlane.f32.xlu0 %v809
    %v811 = vpop.xlane.xlu0 %810
    %v812 = vsel %vm229, %v796, 0.0
    %813 = vadd.xlane.f32.xlu0 %v812
    %v814 = vpop.xlane.xlu0 %813
    %v815 = vsel %vm229, %v797, 0.0
    %816 = vadd.xlane.f32.xlu0 %v815
    %v817 = vpop.xlane.xlu0 %816
    %v818 = vsel %vm229, %v798, 0.0
    %819 = vadd.xlane.f32.xlu0 %v818
    %v820 = vpop.xlane.xlu0 %819
    %v821 = vsel %vm229, %v799, 0.0
    %822 = vadd.xlane.f32.xlu0 %v821
    %v823 = vpop.xlane.xlu0 %822
    %vm824 = vcmask 1041408
    %v825 = vsel %vm824, %v802, -inf
    %v826 = vsel %vm824, %v805, -inf
    %v827 = vsel %vm824, %v808, -inf
    %v828 = vsel %vm824, %v811, -inf
    %v829 = vsel %vm824, %v814, -inf
    %v830 = vmax.f32 %v825, %v829
    %v831 = vsel %vm824, %v817, -inf
    %v832 = vmax.f32 %v826, %v831
    %v833 = vsel %vm824, %v820, -inf
    %v834 = vmax.f32 %v827, %v833
    %v835 = vsel %vm824, %v823, -inf
    %v836 = vmax.f32 %v828, %v835
    %v837 = vmax.f32 %v830, %v832
    %v838 = vmax.f32 %v834, %v836
    %v839 = vmax.f32 %v837, %v838
    %v840 = vsub.f32 %v802, %v839
    %v841 = vsub.f32 %v805, %v839
    %v842 = vsub.f32 %v808, %v839
    %v843 = vsub.f32 %v811, %v839
    %v844 = vsub.f32 %v814, %v839
    %v845 = vsub.f32 %v817, %v839
    %v846 = vsub.f32 %v820, %v839
    %v847 = vsub.f32 %v823, %v839
    %v848 = vmul.f32 %v840, 1.442695
    %v849 = vpow.pop %v848
    %v850 = vmul.f32 %v841, 1.442695
    %v851 = vpow.pop %v850
    %v852 = vmul.f32 %v842, 1.442695
    %v853 = vpow.pop %v852
    %v854 = vmul.f32 %v843, 1.442695
    %v855 = vpow.pop %v854
    %v856 = vmul.f32 %v844, 1.442695
    %v857 = vpow.pop %v856
    %v858 = vmul.f32 %v845, 1.442695
    %v859 = vpow.pop %v858
    %v860 = vmul.f32 %v846, 1.442695
    %v861 = vpow.pop %v860
    %v862 = vmul.f32 %v847, 1.442695
    %v863 = vpow.pop %v862
    %v864 = vsel %vm824, %v849, 0.0
    %v865 = vsel %vm824, %v851, 0.0
    %v866 = vadd.f32 %v864, %v865
    %v867 = vsel %vm824, %v853, 0.0
    %v868 = vadd.f32 %v866, %v867
    %v869 = vsel %vm824, %v855, 0.0
    %v870 = vadd.f32 %v868, %v869
    %v871 = vsel %vm824, %v857, 0.0
    %v872 = vadd.f32 %v870, %v871
    %v873 = vsel %vm824, %v859, 0.0
    %v874 = vadd.f32 %v872, %v873
    %v875 = vsel %vm824, %v861, 0.0
    %v876 = vadd.f32 %v874, %v875
    %v877 = vsel %vm824, %v863, 0.0
    %v878 = vadd.f32 %v876, %v877
    %v879 = vrcp.pop %v878
    %v880 = vmul.f32 %v849, %v879
    %v881 = vmul.f32 %v851, %v879
    %v882 = vmul.f32 %v853, %v879
    %v883 = vmul.f32 %v855, %v879
    %v884 = vmul.f32 %v857, %v879
    %v885 = vmul.f32 %v859, %v879
    %v886 = vmul.f32 %v861, %v879
    %v887 = vmul.f32 %v863, %v879
    %v888 = vmul.f32 %v784, %v880
    %v889 = vmul.f32 %v785, %v881
    %v890 = vmul.f32 %v786, %v882
    %v891 = vmul.f32 %v787, %v883
    %v892 = vmul.f32 %v788, %v884
    %v893 = vmul.f32 %v789, %v885
    %v894 = vmul.f32 %v790, %v886
    %v895 = vmul.f32 %v791, %v887
    %v896 = vsel %vm229, %v888, 0.0
    %v897 = vsel %vm229, %v889, 0.0
    %v898 = vadd.f32 %v896, %v897
    %v899 = vsel %vm229, %v890, 0.0
    %v900 = vadd.f32 %v898, %v899
    %v901 = vsel %vm229, %v891, 0.0
    %v902 = vadd.f32 %v900, %v901
    %v903 = vsel %vm229, %v892, 0.0
    %v904 = vadd.f32 %v902, %v903
    %v905 = vsel %vm229, %v893, 0.0
    %v906 = vadd.f32 %v904, %v905
    %v907 = vsel %vm229, %v894, 0.0
    %v908 = vadd.f32 %v906, %v907
    %v909 = vsel %vm229, %v895, 0.0
    %v910 = vadd.f32 %v908, %v909
    %v911 = vld [vmem:[%s4] sm:$0xff]
    %v912 = vld [vmem:[%s4 + $0x8] sm:$0xff]
    %v913 = vld [vmem:[%s4 + $0x10] sm:$0xff]
    %v914 = vld [vmem:[%s4 + $0x18] sm:$0xff]
    %v915 = vld [vmem:[%s5] sm:$0x1]
    %v917 = vlaneseq
    %v918 = vshrl.u32 %v917, 7
    %v919 = vsub.s32 0, %v918
    %v920 = vrot.slane %v915, %v919
    %v923 = vsel %vm156, %v910, 0
    %925 = vmatprep.subr.mxu0 0.0
    %926 = vmatpush1.msra.mxu0 0.0
    %927 = vmatprep.subr.mxu0 0.0
    %928 = vmatpush1.msra.mxu0 0.0
    %929 = vmatprep.subr.mxu0 0.0
    %930 = vmatpush1.msra.mxu0 0.0
    %931 = vmatprep.subr.mxu0 0.0
    %932 = vmatpush1.msra.mxu0 0.0
    %933 = vmatprep.subr.mxu0 0.0
    %934 = vmatpush1.msra.mxu0 0.0
    %935 = vmatprep.subr.mxu0 0.0
    %936 = vmatpush1.msra.mxu0 0.0
    %937 = vmatprep.subr.mxu0 0.0
    %938 = vmatpush1.msra.mxu0 0.0
    %939 = vmatprep.subr.mxu0 0.0
    %940 = vmatpush1.msra.mxu0 0.0
    %941 = vmatprep.subr.mxu0 0.0
    %942 = vmatpush1.msra.mxu0 0.0
    %943 = vmatprep.subr.mxu0 0.0
    %944 = vmatpush1.msra.mxu0 0.0
    %945 = vmatprep.subr.mxu0 0.0
    %946 = vmatpush1.msra.mxu0 0.0
    %947 = vmatprep.subr.mxu0 0.0
    %948 = vmatpush1.msra.mxu0 0.0
    %949 = vmatprep.subr.mxu0 0.0
    %950 = vmatpush1.msra.mxu0 %v914
    %951 = vmatprep.subr.mxu0 0.0
    %952 = vmatpush1.msra.mxu0 %v913
    %953 = vmatprep.subr.mxu0 0.0
    %954 = vmatpush1.msra.mxu0 %v912
    %955 = vmatprep.subr.mxu0 0.0
    %956 = vmatpush1.msra.mxu0 %v911
    %957 = vmatprep.subr.mxu0 0.0
    %958 = vmatpush2.msra.mxu0 0.0
    %959 = vmatprep.subr.mxu0 0.0
    %960 = vmatpush2.msra.mxu0 0.0
    %961 = vmatprep.subr.mxu0 0.0
    %962 = vmatpush2.msra.mxu0 0.0
    %963 = vmatprep.subr.mxu0 0.0
    %964 = vmatpush2.msra.mxu0 0.0
    %965 = vmatprep.subr.mxu0 0.0
    %966 = vmatpush2.msra.mxu0 0.0
    %967 = vmatprep.subr.mxu0 0.0
    %968 = vmatpush2.msra.mxu0 0.0
    %969 = vmatprep.subr.mxu0 0.0
    %970 = vmatpush2.msra.mxu0 0.0
    %971 = vmatprep.subr.mxu0 0.0
    %972 = vmatpush2.msra.mxu0 0.0
    %973 = vmatprep.subr.mxu0 0.0
    %974 = vmatpush2.msra.mxu0 0.0
    %975 = vmatprep.subr.mxu0 0.0
    %976 = vmatpush2.msra.mxu0 0.0
    %977 = vmatprep.subr.mxu0 0.0
    %978 = vmatpush2.msra.mxu0 0.0
    %979 = vmatprep.subr.mxu0 0.0
    %980 = vmatpush2.msra.mxu0 0.0
    %981 = vmatprep.subr.mxu0 0.0
    %982 = vmatpush2.msra.mxu0 0.0
    %983 = vmatprep.subr.mxu0 0.0
    %984 = vmatpush2.msra.mxu0 0.0
    %985 = vmatprep.subr.mxu0 0.0
    %986 = vmatpush2.msra.mxu0 0.0
    %987 = vmatprep.subr.mxu0 0.0
    %988 = vmatpush2.msra.mxu0 0.0
    %989 = vmatprep.mubr.f32.mxu0 0.0
    %990 = vmatmul.mubr.f32.gmra.mxu0 %v923
    %v991 = vpop.f32.mrf.mxu0
    %v992 = vadd.f32 %v920, %v991
    %v993 = vpop.f32.mrf.mxu0
    %994 = vdwg.mxu0
    %v995 = vld [vmem:[%s6] sm:$0x1]
    %v997 = vlaneseq
    %v998 = vshrl.u32 %v997, 7
    %v999 = vsub.s32 0, %v998
    %v1000 = vrot.slane %v995, %v999
    %v1002 = vmul.f32 %v992, %v1000
    %v1003 = vld [vmem:[%s7] sm:$0x1]
    %v1005 = vlaneseq
    %v1006 = vshrl.u32 %v1005, 7
    %v1007 = vsub.s32 0, %v1006
    %v1008 = vrot.slane %v1003, %v1007
    %v1010 = vadd.f32 %v1002, %v1008
    %vm1011 = vcmask 58368
    %1012 = vst.msk [vmem:[#allocation9] sm:$0x3] %vm1011, %v1010
    // Predicated region
    $region42: #{rnn_attention_forward.1} parent=1 // pred_check
      _
    $region43: #{rnn_attention_forward.1} parent=1 // pred_check_branch
      %1014 = sbr.rel (0) target = $region45
    $region44: #{rnn_attention_forward.1} parent=1 // pred_region
      %s1016 = ssub.s32 32, 32
      %1017 = vsyncadd [#allocation6], %s1016
      %s1019 = sshll.u32 [#allocation9], 4
      %s1020 = int_to_ptr.vmem [resolvable:$true] %s1019
      %1022 = dma.vmem_to_hbm [thread:$0]  %s1020, 32, %s8, [#allocation6]
    $region45: #{rnn_attention_forward.1} parent=1 // pred_fallthru
      _
    // Predicated region
    $region46: #{rnn_attention_forward.1} parent=1 // pred_check
      _
    $region47: #{rnn_attention_forward.1} parent=1 // pred_check_branch
      %1024 = sbr.rel (0) target = $region49
    $region48: #{rnn_attention_forward.1} parent=1 // pred_region
      %1025 = dma.done [#allocation6], 32
    $region49: #{rnn_attention_forward.1} parent=1 // pred_fallthru
      _
    %1026 = vsyncpa [#allocation5], 1
    %1027 = vsyncpa [#allocation6], 1
    %1028 = vsyncpa [#allocation7], 1

</llo_original>
